<compile_context>
chip_gen: v5e
topology: v5e:2x2
jax: 0.10.0
libtpu: 0.0.40
codegen_flags: <defaults>
</compile_context>

<pallas_src>
import jax
import jax.numpy as jnp
from jax.experimental import pallas as pl
from jax.experimental.pallas import tpu as pltpu

# ----------------- synthetic Granite config -----------------
VOCAB = 128
HIDDEN = 32
NUM_HEADS = 4
NUM_KV_HEADS = 2
HEAD_DIM = HIDDEN // NUM_HEADS          # 8
INTERMEDIATE = 64
NUM_LAYERS = 2
SEQ = 8
RMS_EPS = 1e-6
ROPE_THETA = 10000.0
EMBEDDING_MULT = 12.0                   # config.embedding_multiplier
RESIDUAL_MULT = 0.22                    # config.residual_multiplier
ATTENTION_MULT = 0.0078125              # config.attention_multiplier (softmax scale)

Q_SIZE = NUM_HEADS * HEAD_DIM           # 32
KV_SIZE = NUM_KV_HEADS * HEAD_DIM       # 16
GROUP = NUM_HEADS // NUM_KV_HEADS       # 2
NEG_INF = -1e30                         # f32 additive mask (keep mask math f32 if acts go bf16)


# ----------------- in-kernel helpers -----------------
def _rmsnorm(x, w, eps):
    var = jnp.mean(x * x, axis=-1, keepdims=True)
    return x * jax.lax.rsqrt(var + eps) * w


def _rot_half(x):
    # Static half-width rotate along the last (lane) dim: two static lane
    # slices + concat — the exact lowering of a static-shift roll, no gather.
    h = HEAD_DIM // 2
    return jnp.concatenate([x[..., h:], x[..., :h]], axis=-1)


# ----------------- fused whole-model kernel -----------------
def granite_fwd_kernel(x_ref, cosq_ref, sinq_ref, bias_ref,
                       ln1_ref, ln2_ref, wqkv_ref, wo_ref, wgu_ref, wdown_ref,
                       wnorm_ref, out_ref, hs_s, res_s):
    layer = pl.program_id(0)

    # Layer 0: hidden_states = embed * embedding_multiplier (pre-folded into
    # the table); residual := 0 reproduces the residual=None path.
    @pl.when(layer == 0)
    def _():
        hs_s[...] = x_ref[...]
        res_s[...] = jnp.zeros_like(res_s)

    # ---- fused add + input RMSNorm ----
    res = hs_s[...] + res_s[...]
    x = _rmsnorm(res, ln1_ref[0], RMS_EPS)

    # ---- QKV projection (attention_multiplier pre-folded into Q columns) ----
    qkv = jnp.dot(x, wqkv_ref[0], preferred_element_type=jnp.float32)
    q = qkv[:, :Q_SIZE]
    k = qkv[:, Q_SIZE:Q_SIZE + KV_SIZE]
    v = qkv[:, Q_SIZE + KV_SIZE:]

    d = HEAD_DIM
    # Group-major Q [NUM_KV_HEADS, GROUP*T, d]: the GROUP query heads of each
    # KV group are laid along the token axis, so K/V need no GQA duplication.
    q_g = jnp.stack(
        [jnp.concatenate([q[:, (g * GROUP + r) * d:(g * GROUP + r + 1) * d]
                          for r in range(GROUP)], axis=0)
         for g in range(NUM_KV_HEADS)], axis=0)                      # [KVH, G*T, d]
    kg = jnp.stack([k[:, g * d:(g + 1) * d] for g in range(NUM_KV_HEADS)], axis=0)
    vg = jnp.stack([v[:, g * d:(g + 1) * d] for g in range(NUM_KV_HEADS)], axis=0)

    # ---- neox RoPE, applied once per slab ----
    # out = x*cos + rot_half(x)*sin ; rotate-half sign folded into sin table
    # host-side. cos/sin tables are pre-tiled to [GROUP*T, d] for the
    # group-major Q layout; the first T rows serve K.
    cq = cosq_ref[...]
    sq = sinq_ref[...]
    q_g = q_g * cq[None] + _rot_half(q_g) * sq[None]
    kg = kg * cq[None, :SEQ] + _rot_half(kg) * sq[None, :SEQ]

    # ---- causal attention, batched over KV heads (2 MXU einsums) ----
    s = jnp.einsum("gqd,gkd->gqk", q_g, kg, preferred_element_type=jnp.float32)
    s = s + bias_ref[...][None, :, :]            # precomputed additive causal bias
    m = jnp.max(s, axis=-1, keepdims=True)
    e = jnp.exp(s - m)
    p = e / jnp.sum(e, axis=-1, keepdims=True)   # exact division for logit parity
    o_g = jnp.einsum("gqk,gkd->gqd", p, vg, preferred_element_type=jnp.float32)

    # ---- o_proj with the head concat folded in ----
    # Per-head [T, d] blocks (static sublane slices), head-batched matmul
    # against W_o reshaped [NUM_HEADS, d, HIDDEN] (residual_multiplier folded),
    # then a sum over heads replaces the lane concatenate.
    o_h = jnp.stack([o_g[h // GROUP, (h % GROUP) * SEQ:(h % GROUP + 1) * SEQ, :]
                     for h in range(NUM_HEADS)], axis=0)             # [NH, T, d]
    partial = jnp.einsum("htd,hdo->hto", o_h, wo_ref[0],
                         preferred_element_type=jnp.float32)         # [NH, T, H]
    attn_out = jnp.sum(partial, axis=0)                              # [T, H]

    # ---- fused add + post-attention RMSNorm ----
    res2 = attn_out + res
    x2 = _rmsnorm(res2, ln2_ref[0], RMS_EPS)

    # ---- SwiGLU MLP (residual_multiplier folded into W_down) ----
    gu = jnp.dot(x2, wgu_ref[0], preferred_element_type=jnp.float32)
    gate = gu[:, :INTERMEDIATE]
    up = gu[:, INTERMEDIATE:]
    act = gate * jax.nn.sigmoid(gate) * up
    mlp_out = jnp.dot(act, wdown_ref[0], preferred_element_type=jnp.float32)

    # Carry state to the next grid step (stays in VMEM scratch).
    hs_s[...] = mlp_out
    res_s[...] = res2

    # ---- final RMSNorm folded into the last grid step ----
    @pl.when(layer == NUM_LAYERS - 1)
    def _():
        out_ref[...] = _rmsnorm(mlp_out + res2, wnorm_ref[...], RMS_EPS)


# ----------------- host-side one-time preprocessing -----------------
def prepare_weights(embed_table, layer_weights, norm_w):
    """Stack per-layer weights (leading L dim) and fold all scalar multipliers
    into them (exact algebra).  Runs ONCE, not per forward call."""
    qkv_scale = jnp.concatenate([
        jnp.full((Q_SIZE,), ATTENTION_MULT, jnp.float32),
        jnp.ones((2 * KV_SIZE,), jnp.float32)])[None, :]
    return dict(
        embed=embed_table * EMBEDDING_MULT,
        ln1=jnp.stack([w["ln1"] for w in layer_weights]),                    # [L,1,H]
        ln2=jnp.stack([w["ln2"] for w in layer_weights]),                    # [L,1,H]
        wqkv=jnp.stack([w["wqkv"] * qkv_scale for w in layer_weights]),      # [L,H,Q+2KV]
        wo=jnp.stack([(w["wo"] * RESIDUAL_MULT)
                      .reshape(NUM_HEADS, HEAD_DIM, HIDDEN)
                      for w in layer_weights]),                              # [L,NH,d,H]
        wgu=jnp.stack([w["wgu"] for w in layer_weights]),                    # [L,H,2I]
        wdown=jnp.stack([w["wdown"] * RESIDUAL_MULT for w in layer_weights]),# [L,I,H]
        norm=norm_w,                                                         # [1,H]
    )


def rope_tables(positions):
    """neox tables tiled to [GROUP*T, d]; rotate-half sign folded into sin."""
    half = HEAD_DIM // 2
    inv_freq = 1.0 / (ROPE_THETA ** (jnp.arange(half, dtype=jnp.float32) * 2.0 / HEAD_DIM))
    freqs = positions.astype(jnp.float32)[:, None] * inv_freq[None, :]       # [T, half]
    cos, sin = jnp.cos(freqs), jnp.sin(freqs)
    cos_full = jnp.concatenate([cos, cos], axis=-1)                          # [T, d]
    sin_signed = jnp.concatenate([-sin, sin], axis=-1)                       # [T, d]
    return jnp.tile(cos_full, (GROUP, 1)), jnp.tile(sin_signed, (GROUP, 1))  # [G*T, d]


def causal_bias(positions):
    """Additive causal mask, tiled to [GROUP*T, T] for the group-major Q layout."""
    allow = positions[:, None] >= positions[None, :]
    bias = jnp.where(allow, 0.0, NEG_INF).astype(jnp.float32)                # [T, T]
    return jnp.tile(bias, (GROUP, 1))                                        # [G*T, T]


# ----------------- per-call forward (jitted) -----------------
@jax.jit
def granite_forward(input_ids, positions, weights):
    # Embedding gather is JAX glue (VocabParallelEmbedding lookup).
    hs = jnp.take(weights["embed"], input_ids, axis=0)
    cos_q, sin_q = rope_tables(positions)
    bias = causal_bias(positions)

    grid_spec = pltpu.PrefetchScalarGridSpec(
        num_scalar_prefetch=0,
        grid=(NUM_LAYERS,),
        in_specs=[
            pl.BlockSpec((SEQ, HIDDEN), lambda l: (0, 0)),                   # embeddings
            pl.BlockSpec((GROUP * SEQ, HEAD_DIM), lambda l: (0, 0)),         # cos (tiled)
            pl.BlockSpec((GROUP * SEQ, HEAD_DIM), lambda l: (0, 0)),         # sin (signed, tiled)
            pl.BlockSpec((GROUP * SEQ, SEQ), lambda l: (0, 0)),              # causal bias
            pl.BlockSpec((1, 1, HIDDEN), lambda l: (l, 0, 0)),               # ln1
            pl.BlockSpec((1, 1, HIDDEN), lambda l: (l, 0, 0)),               # ln2
            pl.BlockSpec((1, HIDDEN, Q_SIZE + 2 * KV_SIZE), lambda l: (l, 0, 0)),
            pl.BlockSpec((1, NUM_HEADS, HEAD_DIM, HIDDEN), lambda l: (l, 0, 0, 0)),
            pl.BlockSpec((1, HIDDEN, 2 * INTERMEDIATE), lambda l: (l, 0, 0)),
            pl.BlockSpec((1, INTERMEDIATE, HIDDEN), lambda l: (l, 0, 0)),
            pl.BlockSpec((1, HIDDEN), lambda l: (0, 0)),                     # final norm w
        ],
        out_specs=pl.BlockSpec((SEQ, HIDDEN), lambda l: (0, 0)),
        scratch_shapes=[pltpu.VMEM((SEQ, HIDDEN), jnp.float32),              # hidden_states
                        pltpu.VMEM((SEQ, HIDDEN), jnp.float32)],             # residual
    )
    return pl.pallas_call(
        granite_fwd_kernel,
        out_shape=jax.ShapeDtypeStruct((SEQ, HIDDEN), jnp.float32),
        grid_spec=grid_spec,
        compiler_params=pltpu.CompilerParams(
            dimension_semantics=("arbitrary",)),
    )(hs, cos_q, sin_q, bias, weights["ln1"], weights["ln2"], weights["wqkv"],
      weights["wo"], weights["wgu"], weights["wdown"], weights["norm"])


# ----------------- pure-JAX reference (original, un-folded semantics) -----------------
def _ref_rmsnorm(x, w):
    return x * jax.lax.rsqrt(jnp.mean(x * x, axis=-1, keepdims=True) + RMS_EPS) * w


def _ref_rope_neox(x, cos, sin):
    half = x.shape[-1] // 2
    x1, x2 = x[:, :half], x[:, half:]
    return jnp.concatenate([x1 * cos - x2 * sin, x2 * cos + x1 * sin], axis=-1)


def granite_reference(input_ids, positions, embed_table, layer_weights, norm_w):
    half = HEAD_DIM // 2
    inv_freq = 1.0 / (ROPE_THETA ** (jnp.arange(half, dtype=jnp.float32) * 2.0 / HEAD_DIM))
    freqs = positions.astype(jnp.float32)[:, None] * inv_freq[None, :]
    cos, sin = jnp.cos(freqs), jnp.sin(freqs)

    hs = jnp.take(embed_table, input_ids, axis=0) * EMBEDDING_MULT
    res = jnp.zeros_like(hs)
    causal = jnp.tril(jnp.ones((SEQ, SEQ), bool))
    for w in layer_weights:
        res = hs + res
        x = _ref_rmsnorm(res, w["ln1"])
        qkv = x @ w["wqkv"]
        q = qkv[:, :Q_SIZE]
        k = qkv[:, Q_SIZE:Q_SIZE + KV_SIZE]
        v = qkv[:, Q_SIZE + KV_SIZE:]
        heads = []
        for h in range(NUM_HEADS):
            g = h // GROUP
            qh = _ref_rope_neox(q[:, h * HEAD_DIM:(h + 1) * HEAD_DIM], cos, sin)
            kh = _ref_rope_neox(k[:, g * HEAD_DIM:(g + 1) * HEAD_DIM], cos, sin)
            vh = v[:, g * HEAD_DIM:(g + 1) * HEAD_DIM]
            s = (qh @ kh.T) * ATTENTION_MULT
            s = jnp.where(causal, s, -jnp.inf)
            heads.append(jax.nn.softmax(s, axis=-1) @ vh)
        attn = jnp.concatenate(heads, axis=-1)
        hs = (attn @ w["wo"]) * RESIDUAL_MULT
        res = hs + res
        x2 = _ref_rmsnorm(res, w["ln2"])
        gu = x2 @ w["wgu"]
        act = jax.nn.silu(gu[:, :INTERMEDIATE]) * gu[:, INTERMEDIATE:]
        hs = (act @ w["wdown"]) * RESIDUAL_MULT
    return _ref_rmsnorm(hs + res, norm_w)


# ----------------- main -----------------
if __name__ == "__main__":
    key = jax.random.PRNGKey(0)
    keys = jax.random.split(key, 2 + NUM_LAYERS)

    embed_table = jax.random.normal(keys[0], (VOCAB, HIDDEN), jnp.float32) * 0.02
    norm_w = jnp.ones((1, HIDDEN), jnp.float32)

    layer_weights = []
    for i in range(NUM_LAYERS):
        k0, k1, k2, k3 = jax.random.split(keys[1 + i], 4)
        layer_weights.append(dict(
            ln1=jnp.ones((1, HIDDEN), jnp.float32),
            ln2=jnp.ones((1, HIDDEN), jnp.float32),
            wqkv=jax.random.normal(k0, (HIDDEN, Q_SIZE + 2 * KV_SIZE), jnp.float32) * 0.05,
            wo=jax.random.normal(k1, (Q_SIZE, HIDDEN), jnp.float32) * 0.05,
            wgu=jax.random.normal(k2, (HIDDEN, 2 * INTERMEDIATE), jnp.float32) * 0.05,
            wdown=jax.random.normal(k3, (INTERMEDIATE, HIDDEN), jnp.float32) * 0.05,
        ))

    input_ids = jax.random.randint(keys[-1], (SEQ,), 0, VOCAB, dtype=jnp.int32)
    positions = jnp.arange(SEQ, dtype=jnp.int32)

    # One-time weight preprocessing (stacking + multiplier folding) — kept out
    # of the per-call jitted forward per the perf review.
    prepared = prepare_weights(embed_table, layer_weights, norm_w)
    prepared = jax.tree_util.tree_map(jax.block_until_ready, prepared)

    out = granite_forward(input_ids, positions, prepared)
    out = jax.block_until_ready(out)

    ref = granite_reference(input_ids, positions, embed_table, layer_weights, norm_w)

    assert out.shape == (SEQ, HIDDEN)
    assert bool(jnp.all(jnp.isfinite(out)))
    assert bool(jnp.allclose(out, ref, rtol=5e-2, atol=5e-2)), \
        float(jnp.max(jnp.abs(out - ref)))
    print("KERNEL_OK")
</pallas_src>

<mosaic_0001>
module attributes {stable_mosaic.version = 11 : i64} {
  func.func @granite_fwd_kernel(%arg0: i32, %arg1: memref<8x32xf32, #tpu.memory_space<vmem>>, %arg2: memref<16x8xf32, #tpu.memory_space<vmem>>, %arg3: memref<16x8xf32, #tpu.memory_space<vmem>>, %arg4: memref<16x8xf32, #tpu.memory_space<vmem>>, %arg5: memref<1x1x32xf32, #tpu.memory_space<vmem>>, %arg6: memref<1x1x32xf32, #tpu.memory_space<vmem>>, %arg7: memref<1x32x64xf32, #tpu.memory_space<vmem>>, %arg8: memref<1x4x8x32xf32, #tpu.memory_space<vmem>>, %arg9: memref<1x32x128xf32, #tpu.memory_space<vmem>>, %arg10: memref<1x64x32xf32, #tpu.memory_space<vmem>>, %arg11: memref<1x32xf32, #tpu.memory_space<vmem>>, %arg12: memref<8x32xf32, #tpu.memory_space<vmem>>, %arg13: memref<8x32xf32, #tpu.memory_space<vmem>>, %arg14: memref<8x32xf32, #tpu.memory_space<vmem>>) attributes {dimension_semantics = [#tpu.dimension_semantics<arbitrary>], iteration_bounds = array<i64: 2>, scalar_prefetch = 0 : i64, scratch_operands = 2 : i64, tpu.core_type = #tpu.core_type<tc>, window_params = [{pipeline_mode = #tpu.pipeline_mode<synchronous>, transform_indices = @transform_0, window_bounds = array<i64: 8, 32>}, {pipeline_mode = #tpu.pipeline_mode<synchronous>, transform_indices = @transform_1, window_bounds = array<i64: 16, 8>}, {pipeline_mode = #tpu.pipeline_mode<synchronous>, transform_indices = @transform_2, window_bounds = array<i64: 16, 8>}, {pipeline_mode = #tpu.pipeline_mode<synchronous>, transform_indices = @transform_3, window_bounds = array<i64: 16, 8>}, {transform_indices = @transform_4, window_bounds = array<i64: 1, 1, 32>}, {transform_indices = @transform_5, window_bounds = array<i64: 1, 1, 32>}, {transform_indices = @transform_6, window_bounds = array<i64: 1, 32, 64>}, {transform_indices = @transform_7, window_bounds = array<i64: 1, 4, 8, 32>}, {transform_indices = @transform_8, window_bounds = array<i64: 1, 32, 128>}, {transform_indices = @transform_9, window_bounds = array<i64: 1, 64, 32>}, {pipeline_mode = #tpu.pipeline_mode<synchronous>, transform_indices = @transform_10, window_bounds = array<i64: 1, 32>}, {pipeline_mode = #tpu.pipeline_mode<synchronous>, transform_indices = @transform_11, window_bounds = array<i64: 8, 32>}]} {
    %c0_i32 = arith.constant 0 : i32
    %0 = arith.cmpi eq, %arg0, %c0_i32 : i32
    %1 = arith.extui %0 : i1 to i32
    %c0_i32_0 = arith.constant 0 : i32
    %2 = arith.cmpi ne, %1, %c0_i32_0 : i32
    scf.if %2 {
      %c0_49 = arith.constant 0 : index
      %c0_50 = arith.constant 0 : index
      %136 = vector.load %arg1[%c0_49, %c0_50] : memref<8x32xf32, #tpu.memory_space<vmem>>, vector<8x32xf32>
      %c0_51 = arith.constant 0 : index
      %c0_52 = arith.constant 0 : index
      %137 = vector.load %arg13[%c0_51, %c0_52] : memref<8x32xf32, #tpu.memory_space<vmem>>, vector<8x32xf32>
      tpu.vector_store %arg13[%c0_51, %c0_52], %136 {strides = array<i32>} : memref<8x32xf32, #tpu.memory_space<vmem>>, vector<8x32xf32>,
      %cst_53 = arith.constant 0.000000e+00 : f32
      %138 = vector.broadcast %cst_53 : f32 to vector<8x32xf32>
      %c0_54 = arith.constant 0 : index
      %c0_55 = arith.constant 0 : index
      %139 = vector.load %arg14[%c0_54, %c0_55] : memref<8x32xf32, #tpu.memory_space<vmem>>, vector<8x32xf32>
      tpu.vector_store %arg14[%c0_54, %c0_55], %138 {strides = array<i32>} : memref<8x32xf32, #tpu.memory_space<vmem>>, vector<8x32xf32>,
    } else {
    }
    %c0 = arith.constant 0 : index
    %c0_1 = arith.constant 0 : index
    %3 = vector.load %arg13[%c0, %c0_1] : memref<8x32xf32, #tpu.memory_space<vmem>>, vector<8x32xf32>
    %c0_2 = arith.constant 0 : index
    %c0_3 = arith.constant 0 : index
    %4 = vector.load %arg14[%c0_2, %c0_3] : memref<8x32xf32, #tpu.memory_space<vmem>>, vector<8x32xf32>
    %5 = arith.addf %3, %4 : vector<8x32xf32>
    %c0_4 = arith.constant 0 : index
    %c0_5 = arith.constant 0 : index
    %c0_6 = arith.constant 0 : index
    %6 = vector.load %arg5[%c0_4, %c0_5, %c0_6] : memref<1x1x32xf32, #tpu.memory_space<vmem>>, vector<1x1x32xf32>
    %7 = vector.shape_cast %6 : vector<1x1x32xf32> to vector<1x32xf32>
    %8 = arith.mulf %5, %5 : vector<8x32xf32>
    %cst = arith.constant dense<0.000000e+00> : vector<8xf32>
    %9 = vector.multi_reduction <add>, %8, %cst [1] : vector<8x32xf32> to vector<8xf32>
    %10 = vector.shape_cast %9 : vector<8xf32> to vector<8x1xf32>
    %cst_7 = arith.constant 3.200000e+01 : f32
    %11 = vector.broadcast %cst_7 : f32 to vector<8x1xf32>
    %12 = arith.divf %10, %11 : vector<8x1xf32>
    %cst_8 = arith.constant 9.99999997E-7 : f32
    %13 = vector.broadcast %cst_8 : f32 to vector<8x1xf32>
    %14 = arith.addf %12, %13 : vector<8x1xf32>
    %15 = math.rsqrt %14 : vector<8x1xf32>
    %16 = vector.broadcast %15 : vector<8x1xf32> to vector<8x32xf32>
    %17 = arith.mulf %5, %16 : vector<8x32xf32>
    %18 = vector.broadcast %7 : vector<1x32xf32> to vector<8x32xf32>
    %19 = arith.mulf %17, %18 : vector<8x32xf32>
    %c0_9 = arith.constant 0 : index
    %c0_10 = arith.constant 0 : index
    %c0_11 = arith.constant 0 : index
    %20 = vector.load %arg7[%c0_9, %c0_10, %c0_11] : memref<1x32x64xf32, #tpu.memory_space<vmem>>, vector<1x32x64xf32>
    %21 = vector.shape_cast %20 : vector<1x32x64xf32> to vector<32x64xf32>
    %cst_12 = arith.constant dense<0.000000e+00> : vector<8x64xf32>
    %22 = tpu.matmul %19, %21, %cst_12 {dimension_numbers = #tpu.dot_dimension_numbers<[1], [0], [0], [1], [0, 0, 1, 1], [], []>} : vector<8x32xf32>, vector<32x64xf32>, vector<8x64xf32> -> vector<8x64xf32>
    %23 = vector.extract_strided_slice %22 {offsets = [0, 0], sizes = [8, 32], strides = [1, 1]} : vector<8x64xf32> to vector<8x32xf32>
    %24 = vector.extract_strided_slice %22 {offsets = [0, 32], sizes = [8, 16], strides = [1, 1]} : vector<8x64xf32> to vector<8x16xf32>
    %25 = vector.extract_strided_slice %22 {offsets = [0, 48], sizes = [8, 16], strides = [1, 1]} : vector<8x64xf32> to vector<8x16xf32>
    %26 = vector.extract_strided_slice %23 {offsets = [0, 0], sizes = [8, 8], strides = [1, 1]} : vector<8x32xf32> to vector<8x8xf32>
    %27 = vector.extract_strided_slice %23 {offsets = [0, 8], sizes = [8, 8], strides = [1, 1]} : vector<8x32xf32> to vector<8x8xf32>
    %28 = tpu.concatenate %26, %27 in 0 : vector<8x8xf32>, vector<8x8xf32> -> vector<16x8xf32>
    %29 = vector.extract_strided_slice %23 {offsets = [0, 16], sizes = [8, 8], strides = [1, 1]} : vector<8x32xf32> to vector<8x8xf32>
    %30 = vector.extract_strided_slice %23 {offsets = [0, 24], sizes = [8, 8], strides = [1, 1]} : vector<8x32xf32> to vector<8x8xf32>
    %31 = tpu.concatenate %29, %30 in 0 : vector<8x8xf32>, vector<8x8xf32> -> vector<16x8xf32>
    %32 = vector.shape_cast %28 : vector<16x8xf32> to vector<1x16x8xf32>
    %33 = vector.shape_cast %31 : vector<16x8xf32> to vector<1x16x8xf32>
    %34 = tpu.concatenate %32, %33 in 0 : vector<1x16x8xf32>, vector<1x16x8xf32> -> vector<2x16x8xf32>
    %35 = vector.extract_strided_slice %24 {offsets = [0, 0], sizes = [8, 8], strides = [1, 1]} : vector<8x16xf32> to vector<8x8xf32>
    %36 = vector.extract_strided_slice %24 {offsets = [0, 8], sizes = [8, 8], strides = [1, 1]} : vector<8x16xf32> to vector<8x8xf32>
    %37 = vector.shape_cast %35 : vector<8x8xf32> to vector<1x8x8xf32>
    %38 = vector.shape_cast %36 : vector<8x8xf32> to vector<1x8x8xf32>
    %39 = tpu.concatenate %37, %38 in 0 : vector<1x8x8xf32>, vector<1x8x8xf32> -> vector<2x8x8xf32>
    %40 = vector.extract_strided_slice %25 {offsets = [0, 0], sizes = [8, 8], strides = [1, 1]} : vector<8x16xf32> to vector<8x8xf32>
    %41 = vector.extract_strided_slice %25 {offsets = [0, 8], sizes = [8, 8], strides = [1, 1]} : vector<8x16xf32> to vector<8x8xf32>
    %42 = vector.shape_cast %40 : vector<8x8xf32> to vector<1x8x8xf32>
    %43 = vector.shape_cast %41 : vector<8x8xf32> to vector<1x8x8xf32>
    %44 = tpu.concatenate %42, %43 in 0 : vector<1x8x8xf32>, vector<1x8x8xf32> -> vector<2x8x8xf32>
    %c0_13 = arith.constant 0 : index
    %c0_14 = arith.constant 0 : index
    %45 = vector.load %arg2[%c0_13, %c0_14] : memref<16x8xf32, #tpu.memory_space<vmem>>, vector<16x8xf32>
    %c0_15 = arith.constant 0 : index
    %c0_16 = arith.constant 0 : index
    %46 = vector.load %arg3[%c0_15, %c0_16] : memref<16x8xf32, #tpu.memory_space<vmem>>, vector<16x8xf32>
    %47 = vector.shape_cast %45 : vector<16x8xf32> to vector<1x16x8xf32>
    %48 = vector.broadcast %47 : vector<1x16x8xf32> to vector<2x16x8xf32>
    %49 = arith.mulf %34, %48 : vector<2x16x8xf32>
    %50 = vector.extract_strided_slice %34 {offsets = [0, 0, 4], sizes = [2, 16, 4], strides = [1, 1, 1]} : vector<2x16x8xf32> to vector<2x16x4xf32>
    %51 = vector.extract_strided_slice %34 {offsets = [0, 0, 0], sizes = [2, 16, 4], strides = [1, 1, 1]} : vector<2x16x8xf32> to vector<2x16x4xf32>
    %52 = tpu.concatenate %50, %51 in 2 : vector<2x16x4xf32>, vector<2x16x4xf32> -> vector<2x16x8xf32>
    %53 = vector.shape_cast %46 : vector<16x8xf32> to vector<1x16x8xf32>
    %54 = vector.broadcast %53 : vector<1x16x8xf32> to vector<2x16x8xf32>
    %55 = arith.mulf %52, %54 : vector<2x16x8xf32>
    %56 = arith.addf %49, %55 : vector<2x16x8xf32>
    %57 = vector.extract_strided_slice %45 {offsets = [0, 0], sizes = [8, 8], strides = [1, 1]} : vector<16x8xf32> to vector<8x8xf32>
    %58 = vector.shape_cast %57 : vector<8x8xf32> to vector<1x8x8xf32>
    %59 = vector.broadcast %58 : vector<1x8x8xf32> to vector<2x8x8xf32>
    %60 = arith.mulf %39, %59 : vector<2x8x8xf32>
    %61 = vector.extract_strided_slice %39 {offsets = [0, 0, 4], sizes = [2, 8, 4], strides = [1, 1, 1]} : vector<2x8x8xf32> to vector<2x8x4xf32>
    %62 = vector.extract_strided_slice %39 {offsets = [0, 0, 0], sizes = [2, 8, 4], strides = [1, 1, 1]} : vector<2x8x8xf32> to vector<2x8x4xf32>
    %63 = tpu.concatenate %61, %62 in 2 : vector<2x8x4xf32>, vector<2x8x4xf32> -> vector<2x8x8xf32>
    %64 = vector.extract_strided_slice %46 {offsets = [0, 0], sizes = [8, 8], strides = [1, 1]} : vector<16x8xf32> to vector<8x8xf32>
    %65 = vector.shape_cast %64 : vector<8x8xf32> to vector<1x8x8xf32>
    %66 = vector.broadcast %65 : vector<1x8x8xf32> to vector<2x8x8xf32>
    %67 = arith.mulf %63, %66 : vector<2x8x8xf32>
    %68 = arith.addf %60, %67 : vector<2x8x8xf32>
    "tpu.trace_start"() <{level = 10 : i32, message = "gqd,gkd->gqk"}> : () -> ()
    %cst_17 = arith.constant dense<0.000000e+00> : vector<2x16x8xf32>
    %69 = tpu.matmul %56, %68, %cst_17 {dimension_numbers = #tpu.dot_dimension_numbers<[2], [2], [1], [1], [0, 0, 0, 1, 1, 1], [0], [0]>} : vector<2x16x8xf32>, vector<2x8x8xf32>, vector<2x16x8xf32> -> vector<2x16x8xf32>
    "tpu.trace_stop"() : () -> ()
    %c0_18 = arith.constant 0 : index
    %c0_19 = arith.constant 0 : index
    %70 = vector.load %arg4[%c0_18, %c0_19] : memref<16x8xf32, #tpu.memory_space<vmem>>, vector<16x8xf32>
    %71 = vector.shape_cast %70 : vector<16x8xf32> to vector<1x16x8xf32>
    %72 = vector.broadcast %71 : vector<1x16x8xf32> to vector<2x16x8xf32>
    %73 = arith.addf %69, %72 : vector<2x16x8xf32>
    %cst_20 = arith.constant dense<0xFF800000> : vector<2x16xf32>
    %74 = vector.multi_reduction <maximumf>, %73, %cst_20 [2] : vector<2x16x8xf32> to vector<2x16xf32>
    %75 = vector.shape_cast %74 : vector<2x16xf32> to vector<2x16x1xf32>
    %76 = vector.broadcast %75 : vector<2x16x1xf32> to vector<2x16x8xf32>
    %77 = arith.subf %73, %76 : vector<2x16x8xf32>
    %78 = math.exp %77 : vector<2x16x8xf32>
    %cst_21 = arith.constant dense<0.000000e+00> : vector<2x16xf32>
    %79 = vector.multi_reduction <add>, %78, %cst_21 [2] : vector<2x16x8xf32> to vector<2x16xf32>
    %80 = vector.shape_cast %79 : vector<2x16xf32> to vector<2x16x1xf32>
    %81 = vector.broadcast %80 : vector<2x16x1xf32> to vector<2x16x8xf32>
    %82 = arith.divf %78, %81 : vector<2x16x8xf32>
    "tpu.trace_start"() <{level = 10 : i32, message = "gqk,gkd->gqd"}> : () -> ()
    %cst_22 = arith.constant dense<0.000000e+00> : vector<2x16x8xf32>
    %83 = tpu.matmul %82, %44, %cst_22 {dimension_numbers = #tpu.dot_dimension_numbers<[2], [1], [1], [2], [0, 0, 0, 1, 1, 2], [0], [0]>} : vector<2x16x8xf32>, vector<2x8x8xf32>, vector<2x16x8xf32> -> vector<2x16x8xf32>
    "tpu.trace_stop"() : () -> ()
    %84 = vector.extract_strided_slice %83 {offsets = [0, 0, 0], sizes = [1, 8, 8], strides = [1, 1, 1]} : vector<2x16x8xf32> to vector<1x8x8xf32>
    %85 = vector.shape_cast %84 : vector<1x8x8xf32> to vector<8x8xf32>
    %86 = vector.extract_strided_slice %83 {offsets = [0, 8, 0], sizes = [1, 8, 8], strides = [1, 1, 1]} : vector<2x16x8xf32> to vector<1x8x8xf32>
    %87 = vector.shape_cast %86 : vector<1x8x8xf32> to vector<8x8xf32>
    %88 = vector.extract_strided_slice %83 {offsets = [1, 0, 0], sizes = [1, 8, 8], strides = [1, 1, 1]} : vector<2x16x8xf32> to vector<1x8x8xf32>
    %89 = vector.shape_cast %88 : vector<1x8x8xf32> to vector<8x8xf32>
    %90 = vector.extract_strided_slice %83 {offsets = [1, 8, 0], sizes = [1, 8, 8], strides = [1, 1, 1]} : vector<2x16x8xf32> to vector<1x8x8xf32>
    %91 = vector.shape_cast %90 : vector<1x8x8xf32> to vector<8x8xf32>
    %92 = vector.shape_cast %85 : vector<8x8xf32> to vector<1x8x8xf32>
    %93 = vector.shape_cast %87 : vector<8x8xf32> to vector<1x8x8xf32>
    %94 = vector.shape_cast %89 : vector<8x8xf32> to vector<1x8x8xf32>
    %95 = vector.shape_cast %91 : vector<8x8xf32> to vector<1x8x8xf32>
    %96 = tpu.concatenate %92, %93, %94, %95 in 0 : vector<1x8x8xf32>, vector<1x8x8xf32>, vector<1x8x8xf32>, vector<1x8x8xf32> -> vector<4x8x8xf32>
    %c0_23 = arith.constant 0 : index
    %c0_24 = arith.constant 0 : index
    %c0_25 = arith.constant 0 : index
    %c0_26 = arith.constant 0 : index
    %97 = vector.load %arg8[%c0_23, %c0_24, %c0_25, %c0_26] : memref<1x4x8x32xf32, #tpu.memory_space<vmem>>, vector<1x4x8x32xf32>
    %98 = vector.shape_cast %97 : vector<1x4x8x32xf32> to vector<4x8x32xf32>
    "tpu.trace_start"() <{level = 10 : i32, message = "htd,hdo->hto"}> : () -> ()
    %cst_27 = arith.constant dense<0.000000e+00> : vector<4x8x32xf32>
    %99 = tpu.matmul %96, %98, %cst_27 {dimension_numbers = #tpu.dot_dimension_numbers<[2], [1], [1], [2], [0, 0, 0, 1, 1, 2], [0], [0]>} : vector<4x8x8xf32>, vector<4x8x32xf32>, vector<4x8x32xf32> -> vector<4x8x32xf32>
    "tpu.trace_stop"() : () -> ()
    %cst_28 = arith.constant dense<0.000000e+00> : vector<8x32xf32>
    %100 = vector.multi_reduction <add>, %99, %cst_28 [0] : vector<4x8x32xf32> to vector<8x32xf32>
    %101 = arith.addf %100, %5 : vector<8x32xf32>
    %c0_29 = arith.constant 0 : index
    %c0_30 = arith.constant 0 : index
    %c0_31 = arith.constant 0 : index
    %102 = vector.load %arg6[%c0_29, %c0_30, %c0_31] : memref<1x1x32xf32, #tpu.memory_space<vmem>>, vector<1x1x32xf32>
    %103 = vector.shape_cast %102 : vector<1x1x32xf32> to vector<1x32xf32>
    %104 = arith.mulf %101, %101 : vector<8x32xf32>
    %cst_32 = arith.constant dense<0.000000e+00> : vector<8xf32>
    %105 = vector.multi_reduction <add>, %104, %cst_32 [1] : vector<8x32xf32> to vector<8xf32>
    %106 = vector.shape_cast %105 : vector<8xf32> to vector<8x1xf32>
    %cst_33 = arith.constant 3.200000e+01 : f32
    %107 = vector.broadcast %cst_33 : f32 to vector<8x1xf32>
    %108 = arith.divf %106, %107 : vector<8x1xf32>
    %cst_34 = arith.constant 9.99999997E-7 : f32
    %109 = vector.broadcast %cst_34 : f32 to vector<8x1xf32>
    %110 = arith.addf %108, %109 : vector<8x1xf32>
    %111 = math.rsqrt %110 : vector<8x1xf32>
    %112 = vector.broadcast %111 : vector<8x1xf32> to vector<8x32xf32>
    %113 = arith.mulf %101, %112 : vector<8x32xf32>
    %114 = vector.broadcast %103 : vector<1x32xf32> to vector<8x32xf32>
    %115 = arith.mulf %113, %114 : vector<8x32xf32>
    %c0_35 = arith.constant 0 : index
    %c0_36 = arith.constant 0 : index
    %c0_37 = arith.constant 0 : index
    %116 = vector.load %arg9[%c0_35, %c0_36, %c0_37] : memref<1x32x128xf32, #tpu.memory_space<vmem>>, vector<1x32x128xf32>
    %117 = vector.shape_cast %116 : vector<1x32x128xf32> to vector<32x128xf32>
    %cst_38 = arith.constant dense<0.000000e+00> : vector<8x128xf32>
    %118 = tpu.matmul %115, %117, %cst_38 {dimension_numbers = #tpu.dot_dimension_numbers<[1], [0], [0], [1], [0, 0, 1, 1], [], []>} : vector<8x32xf32>, vector<32x128xf32>, vector<8x128xf32> -> vector<8x128xf32>
    %119 = vector.extract_strided_slice %118 {offsets = [0, 0], sizes = [8, 64], strides = [1, 1]} : vector<8x128xf32> to vector<8x64xf32>
    %120 = vector.extract_strided_slice %118 {offsets = [0, 64], sizes = [8, 64], strides = [1, 1]} : vector<8x128xf32> to vector<8x64xf32>
    %121 = arith.negf %119 : vector<8x64xf32>
    %122 = math.exp %121 : vector<8x64xf32>
    %cst_39 = arith.constant 1.000000e+00 : f32
    %123 = vector.broadcast %cst_39 : f32 to vector<8x64xf32>
    %124 = arith.addf %123, %122 : vector<8x64xf32>
    %125 = arith.divf %123, %124 : vector<8x64xf32>
    %126 = arith.mulf %119, %125 : vector<8x64xf32>
    %127 = arith.mulf %126, %120 : vector<8x64xf32>
    %c0_40 = arith.constant 0 : index
    %c0_41 = arith.constant 0 : index
    %c0_42 = arith.constant 0 : index
    %128 = vector.load %arg10[%c0_40, %c0_41, %c0_42] : memref<1x64x32xf32, #tpu.memory_space<vmem>>, vector<1x64x32xf32>
    %129 = vector.shape_cast %128 : vector<1x64x32xf32> to vector<64x32xf32>
    %cst_43 = arith.constant dense<0.000000e+00> : vector<8x32xf32>
    %130 = tpu.matmul %127, %129, %cst_43 {dimension_numbers = #tpu.dot_dimension_numbers<[1], [0], [0], [1], [0, 0, 1, 1], [], []>} : vector<8x64xf32>, vector<64x32xf32>, vector<8x32xf32> -> vector<8x32xf32>
    %c0_44 = arith.constant 0 : index
    %c0_45 = arith.constant 0 : index
    %131 = vector.load %arg13[%c0_44, %c0_45] : memref<8x32xf32, #tpu.memory_space<vmem>>, vector<8x32xf32>
    tpu.vector_store %arg13[%c0_44, %c0_45], %130 {strides = array<i32>} : memref<8x32xf32, #tpu.memory_space<vmem>>, vector<8x32xf32>,
    %c0_46 = arith.constant 0 : index
    %c0_47 = arith.constant 0 : index
    %132 = vector.load %arg14[%c0_46, %c0_47] : memref<8x32xf32, #tpu.memory_space<vmem>>, vector<8x32xf32>
    tpu.vector_store %arg14[%c0_46, %c0_47], %101 {strides = array<i32>} : memref<8x32xf32, #tpu.memory_space<vmem>>, vector<8x32xf32>,
    %c1_i32 = arith.constant 1 : i32
    %133 = arith.cmpi eq, %arg0, %c1_i32 : i32
    %134 = arith.extui %133 : i1 to i32
    %c0_i32_48 = arith.constant 0 : i32
    %135 = arith.cmpi ne, %134, %c0_i32_48 : i32
    scf.if %135 {
      %136 = arith.addf %130, %101 : vector<8x32xf32>
      %c0_49 = arith.constant 0 : index
      %c0_50 = arith.constant 0 : index
      %137 = vector.load %arg11[%c0_49, %c0_50] : memref<1x32xf32, #tpu.memory_space<vmem>>, vector<1x32xf32>
      %138 = arith.mulf %136, %136 : vector<8x32xf32>
      %cst_51 = arith.constant dense<0.000000e+00> : vector<8xf32>
      %139 = vector.multi_reduction <add>, %138, %cst_51 [1] : vector<8x32xf32> to vector<8xf32>
      %140 = vector.shape_cast %139 : vector<8xf32> to vector<8x1xf32>
      %cst_52 = arith.constant 3.200000e+01 : f32
      %141 = vector.broadcast %cst_52 : f32 to vector<8x1xf32>
      %142 = arith.divf %140, %141 : vector<8x1xf32>
      %cst_53 = arith.constant 9.99999997E-7 : f32
      %143 = vector.broadcast %cst_53 : f32 to vector<8x1xf32>
      %144 = arith.addf %142, %143 : vector<8x1xf32>
      %145 = math.rsqrt %144 : vector<8x1xf32>
      %146 = vector.broadcast %145 : vector<8x1xf32> to vector<8x32xf32>
      %147 = arith.mulf %136, %146 : vector<8x32xf32>
      %148 = vector.broadcast %137 : vector<1x32xf32> to vector<8x32xf32>
      %149 = arith.mulf %147, %148 : vector<8x32xf32>
      %c0_54 = arith.constant 0 : index
      %c0_55 = arith.constant 0 : index
      %150 = vector.load %arg12[%c0_54, %c0_55] : memref<8x32xf32, #tpu.memory_space<vmem>>, vector<8x32xf32>
      tpu.vector_store %arg12[%c0_54, %c0_55], %149 {strides = array<i32>} : memref<8x32xf32, #tpu.memory_space<vmem>>, vector<8x32xf32>,
    } else {
    }
    return
  }
  func.func @transform_0(%arg0: i32) -> (i32, i32) {
    %c0_i32 = arith.constant 0 : i32
    %c0_i32_0 = arith.constant 0 : i32
    %c0_i32_1 = arith.constant 0 : i32
    return %c0_i32, %c0_i32_0 : i32, i32
  }
  func.func @transform_1(%arg0: i32) -> (i32, i32) {
    %c0_i32 = arith.constant 0 : i32
    %c0_i32_0 = arith.constant 0 : i32
    %c0_i32_1 = arith.constant 0 : i32
    return %c0_i32, %c0_i32_0 : i32, i32
  }
  func.func @transform_2(%arg0: i32) -> (i32, i32) {
    %c0_i32 = arith.constant 0 : i32
    %c0_i32_0 = arith.constant 0 : i32
    %c0_i32_1 = arith.constant 0 : i32
    return %c0_i32, %c0_i32_0 : i32, i32
  }
  func.func @transform_3(%arg0: i32) -> (i32, i32) {
    %c0_i32 = arith.constant 0 : i32
    %c0_i32_0 = arith.constant 0 : i32
    %c0_i32_1 = arith.constant 0 : i32
    return %c0_i32, %c0_i32_0 : i32, i32
  }
  func.func @transform_4(%arg0: i32) -> (i32, i32, i32) {
    %c0_i32 = arith.constant 0 : i32
    %c0_i32_0 = arith.constant 0 : i32
    %c0_i32_1 = arith.constant 0 : i32
    return %arg0, %c0_i32, %c0_i32_0 : i32, i32, i32
  }
  func.func @transform_5(%arg0: i32) -> (i32, i32, i32) {
    %c0_i32 = arith.constant 0 : i32
    %c0_i32_0 = arith.constant 0 : i32
    %c0_i32_1 = arith.constant 0 : i32
    return %arg0, %c0_i32, %c0_i32_0 : i32, i32, i32
  }
  func.func @transform_6(%arg0: i32) -> (i32, i32, i32) {
    %c0_i32 = arith.constant 0 : i32
    %c0_i32_0 = arith.constant 0 : i32
    %c0_i32_1 = arith.constant 0 : i32
    return %arg0, %c0_i32, %c0_i32_0 : i32, i32, i32
  }
  func.func @transform_7(%arg0: i32) -> (i32, i32, i32, i32) {
    %c0_i32 = arith.constant 0 : i32
    %c0_i32_0 = arith.constant 0 : i32
    %c0_i32_1 = arith.constant 0 : i32
    %c0_i32_2 = arith.constant 0 : i32
    return %arg0, %c0_i32, %c0_i32_0, %c0_i32_1 : i32, i32, i32, i32
  }
  func.func @transform_8(%arg0: i32) -> (i32, i32, i32) {
    %c0_i32 = arith.constant 0 : i32
    %c0_i32_0 = arith.constant 0 : i32
    %c0_i32_1 = arith.constant 0 : i32
    return %arg0, %c0_i32, %c0_i32_0 : i32, i32, i32
  }
  func.func @transform_9(%arg0: i32) -> (i32, i32, i32) {
    %c0_i32 = arith.constant 0 : i32
    %c0_i32_0 = arith.constant 0 : i32
    %c0_i32_1 = arith.constant 0 : i32
    return %arg0, %c0_i32, %c0_i32_0 : i32, i32, i32
  }
  func.func @transform_10(%arg0: i32) -> (i32, i32) {
    %c0_i32 = arith.constant 0 : i32
    %c0_i32_0 = arith.constant 0 : i32
    %c0_i32_1 = arith.constant 0 : i32
    return %c0_i32, %c0_i32_0 : i32, i32
  }
  func.func @transform_11(%arg0: i32) -> (i32, i32) {
    %c0_i32 = arith.constant 0 : i32
    %c0_i32_0 = arith.constant 0 : i32
    %c0_i32_1 = arith.constant 0 : i32
    return %c0_i32, %c0_i32_0 : i32, i32
  }
}

</mosaic_0001>

<llo_original>
// kernel: granite_forward.1
$region0: #{granite_forward.1}
  #allocation0 [shape = 'u32[]', space=smem, size = 0x4, offset = 0x4, fixed_abs, tag = 'smem constant byte address 0x4 - core index']
  #allocation1 [shape = 'u32[72,128]{1,0:T(1,128)}', space=vmem, size = 0x9000, scoped, tag = 'internal scratch']
  #allocation2 [shape = 'f32[8,32]{1,0:T(8,128)}', space=vmem, size = 0x1000, scoped, tag = 'scratch operand']
  #allocation3 [shape = 'f32[8,32]{1,0:T(8,128)}', space=vmem, size = 0x1000, scoped, tag = 'scratch operand']
  %s0 = inlined_call_operand.vmem [shape: f32[8,32], index: 0, kind: input, shape index: {}]
  %s1 = inlined_call_operand.vmem [shape: f32[16,8], index: 1, kind: input, shape index: {}]
  %s2 = inlined_call_operand.vmem [shape: f32[16,8], index: 2, kind: input, shape index: {}]
  %s3 = inlined_call_operand.vmem [shape: f32[16,8], index: 3, kind: input, shape index: {}]
  %s4 = inlined_call_operand.vmem [shape: f32[2,1,32], index: 4, kind: input, shape index: {}]
  %s5 = inlined_call_operand.vmem [shape: f32[2,1,32], index: 5, kind: input, shape index: {}]
  %s6 = inlined_call_operand.vmem [shape: f32[2,32,64], index: 6, kind: input, shape index: {}]
  %s7 = inlined_call_operand.vmem [shape: f32[2,4,8,32], index: 7, kind: input, shape index: {}]
  %s8 = inlined_call_operand.vmem [shape: f32[2,32,128], index: 8, kind: input, shape index: {}]
  %s9 = inlined_call_operand.vmem [shape: f32[2,64,32], index: 9, kind: input, shape index: {}]
  %s10 = inlined_call_operand.vmem [shape: f32[1,32], index: 10, kind: input, shape index: {}]
  %s11 = inlined_call_operand.hbm [shape: f32[8,32], index: 11, kind: output, shape index: {}]
  %s12 = sld [smem:[#allocation0]]
  $region85: #{granite_forward.1} parent=0
    _
  %s14 = ssub.s32 1, %s12
  %s15 = scalar_select 0, %s14, %s12
  $region1: #{granite_forward.1} parent=0
    #allocation4 [shape = 'u8[4096]{0}', space=vmem, size = 0x1000, scoped, tag = 'output window, operand 0, single buffered']
    #allocation5 [shape = 's32[2]{0}', space=sflag, size = 0x8, scoped, tag = 'scoped memory for granite_forward.1']
    %16 = vsyncpa [#allocation5], 0
    loop: start=0, step=1, limit=4
    $region2: #{granite_forward.1} parent=1 // loop_pre_header
      _
    $region3: #{granite_forward.1} parent=1 // loop_header
      %s18 = sphi 0, %s22
      %p19 = scmp.ge.s32.totalorder %s18, 4
      %s26 = sphi 0, %s26
      %s28 = sphi 0, %s26
      %s29 = sphi 0, %s28
      %s43 = sphi 0, %s29
      %s47 = sphi 0, %s47
      %s49 = sphi 0, %s47
      %s50 = sphi 0, %s49
      %s64 = sphi 0, %s50
      %s68 = sphi 0, %s68
      %s70 = sphi 0, %s68
      %s71 = sphi 0, %s70
      %s85 = sphi 0, %s71
      %s89 = sphi 0, %s89
      %s91 = sphi 0, %s89
      %s92 = sphi 0, %s91
      %s106 = sphi 0, %s92
      %s112 = sphi 0, %s114
      %s115 = sphi 0, %s112
      %s116 = sphi 0, %s115
      %s132 = sphi 0, %s116
      %s138 = sphi 0, %s140
      %s141 = sphi 0, %s138
      %s142 = sphi 0, %s141
      %s158 = sphi 0, %s142
      %s164 = sphi 0, %s166
      %s167 = sphi 0, %s164
      %s168 = sphi 0, %s167
      %s184 = sphi 0, %s168
      %s190 = sphi 0, %s192
      %s193 = sphi 0, %s190
      %s194 = sphi 0, %s193
      %s210 = sphi 0, %s194
      %s216 = sphi 0, %s218
      %s219 = sphi 0, %s216
      %s220 = sphi 0, %s219
      %s236 = sphi 0, %s220
      %s242 = sphi 0, %s244
      %s245 = sphi 0, %s242
      %s246 = sphi 0, %s245
      %s262 = sphi 0, %s246
      %s266 = sphi 0, %s266
      %s268 = sphi 0, %s266
      %s269 = sphi 0, %s268
      %s283 = sphi 0, %s269
      %s287 = sphi 0, %s287
      %s289 = sphi 0, %s287
      %s290 = sphi 0, %s289
      %s304 = sphi 0, %s290
    $region4: #{granite_forward.1} parent=1 // loop_header_branch
      %21 = sbr.rel (%p19) target = $region8
    $region5: #{granite_forward.1} parent=1 // loop_body
      %s23 = ssub.s32 %s18, 1
      %s24 = ssub.s32 %s18, 2
      %s25 = sadd.s32 %s18, 1
      %s27 = sadd.s32 %s26, 1
      %p30 = scmp.eq.s32.totalorder %s18, 1
      %p31 = scmp.ne.s32.totalorder %s26, %s28
      %p32 = scmp.eq.s32.totalorder %s18, 0
      %p33 = por %p31, %p32
      %p34 = scmp.ne.s32.totalorder %s26, %s28
      %p35 = scmp.eq.s32.totalorder %s23, 1
      %p36 = por %p34, %p35
      %p37 = scmp.ne.s32.totalorder %s28, %s29
      %p38 = scmp.eq.s32.totalorder %s23, 0
      %p39 = por %p37, %p38
      %p40 = scmp.ne.s32.totalorder %s28, %s29
      %p41 = scmp.eq.s32.totalorder %s24, 1
      %p42 = por %p40, %p41
      %p44 = scmp.ne.s32.totalorder %s29, %s43
      %p45 = scmp.eq.s32.totalorder %s24, 0
      %p46 = por %p44, %p45
      %s48 = sadd.s32 %s47, 1
      %p51 = scmp.eq.s32.totalorder %s18, 1
      %p52 = scmp.ne.s32.totalorder %s47, %s49
      %p53 = scmp.eq.s32.totalorder %s18, 0
      %p54 = por %p52, %p53
      %p55 = scmp.ne.s32.totalorder %s47, %s49
      %p56 = scmp.eq.s32.totalorder %s23, 1
      %p57 = por %p55, %p56
      %p58 = scmp.ne.s32.totalorder %s49, %s50
      %p59 = scmp.eq.s32.totalorder %s23, 0
      %p60 = por %p58, %p59
      %p61 = scmp.ne.s32.totalorder %s49, %s50
      %p62 = scmp.eq.s32.totalorder %s24, 1
      %p63 = por %p61, %p62
      %p65 = scmp.ne.s32.totalorder %s50, %s64
      %p66 = scmp.eq.s32.totalorder %s24, 0
      %p67 = por %p65, %p66
      %s69 = sadd.s32 %s68, 1
      %p72 = scmp.eq.s32.totalorder %s18, 1
      %p73 = scmp.ne.s32.totalorder %s68, %s70
      %p74 = scmp.eq.s32.totalorder %s18, 0
      %p75 = por %p73, %p74
      %p76 = scmp.ne.s32.totalorder %s68, %s70
      %p77 = scmp.eq.s32.totalorder %s23, 1
      %p78 = por %p76, %p77
      %p79 = scmp.ne.s32.totalorder %s70, %s71
      %p80 = scmp.eq.s32.totalorder %s23, 0
      %p81 = por %p79, %p80
      %p82 = scmp.ne.s32.totalorder %s70, %s71
      %p83 = scmp.eq.s32.totalorder %s24, 1
      %p84 = por %p82, %p83
      %p86 = scmp.ne.s32.totalorder %s71, %s85
      %p87 = scmp.eq.s32.totalorder %s24, 0
      %p88 = por %p86, %p87
      %s90 = sadd.s32 %s89, 1
      %p93 = scmp.eq.s32.totalorder %s18, 1
      %p94 = scmp.ne.s32.totalorder %s89, %s91
      %p95 = scmp.eq.s32.totalorder %s18, 0
      %p96 = por %p94, %p95
      %p97 = scmp.ne.s32.totalorder %s89, %s91
      %p98 = scmp.eq.s32.totalorder %s23, 1
      %p99 = por %p97, %p98
      %p100 = scmp.ne.s32.totalorder %s91, %s92
      %p101 = scmp.eq.s32.totalorder %s23, 0
      %p102 = por %p100, %p101
      %p103 = scmp.ne.s32.totalorder %s91, %s92
      %p104 = scmp.eq.s32.totalorder %s24, 1
      %p105 = por %p103, %p104
      %p107 = scmp.ne.s32.totalorder %s92, %s106
      %p108 = scmp.eq.s32.totalorder %s24, 0
      %p109 = por %p107, %p108
      %s110 = ssub.s32 %s18, %s25
      %p111 = scmp.eq.s32.totalorder %s110, 0
      %s113 = sadd.s32 %s112, 1
      %s114 = scalar_select %p111, %s112, %s113
      %p117 = pneg %p111
      %p118 = scmp.eq.s32.totalorder %s18, 1
      %p119 = por %p117, %p118
      %p120 = scmp.ne.s32.totalorder %s112, %s115
      %p121 = scmp.eq.s32.totalorder %s18, 0
      %p122 = por %p120, %p121
      %p123 = scmp.ne.s32.totalorder %s112, %s115
      %p124 = scmp.eq.s32.totalorder %s23, 1
      %p125 = por %p123, %p124
      %p126 = scmp.ne.s32.totalorder %s115, %s116
      %p127 = scmp.eq.s32.totalorder %s23, 0
      %p128 = por %p126, %p127
      %p129 = scmp.ne.s32.totalorder %s115, %s116
      %p130 = scmp.eq.s32.totalorder %s24, 1
      %p131 = por %p129, %p130
      %p133 = scmp.ne.s32.totalorder %s116, %s132
      %p134 = scmp.eq.s32.totalorder %s24, 0
      %p135 = por %p133, %p134
      %s136 = ssub.s32 %s18, %s25
      %p137 = scmp.eq.s32.totalorder %s136, 0
      %s139 = sadd.s32 %s138, 1
      %s140 = scalar_select %p137, %s138, %s139
      %p143 = pneg %p137
      %p144 = scmp.eq.s32.totalorder %s18, 1
      %p145 = por %p143, %p144
      %p146 = scmp.ne.s32.totalorder %s138, %s141
      %p147 = scmp.eq.s32.totalorder %s18, 0
      %p148 = por %p146, %p147
      %p149 = scmp.ne.s32.totalorder %s138, %s141
      %p150 = scmp.eq.s32.totalorder %s23, 1
      %p151 = por %p149, %p150
      %p152 = scmp.ne.s32.totalorder %s141, %s142
      %p153 = scmp.eq.s32.totalorder %s23, 0
      %p154 = por %p152, %p153
      %p155 = scmp.ne.s32.totalorder %s141, %s142
      %p156 = scmp.eq.s32.totalorder %s24, 1
      %p157 = por %p155, %p156
      %p159 = scmp.ne.s32.totalorder %s142, %s158
      %p160 = scmp.eq.s32.totalorder %s24, 0
      %p161 = por %p159, %p160
      %s162 = ssub.s32 %s18, %s25
      %p163 = scmp.eq.s32.totalorder %s162, 0
      %s165 = sadd.s32 %s164, 1
      %s166 = scalar_select %p163, %s164, %s165
      %p169 = pneg %p163
      %p170 = scmp.eq.s32.totalorder %s18, 1
      %p171 = por %p169, %p170
      %p172 = scmp.ne.s32.totalorder %s164, %s167
      %p173 = scmp.eq.s32.totalorder %s18, 0
      %p174 = por %p172, %p173
      %p175 = scmp.ne.s32.totalorder %s164, %s167
      %p176 = scmp.eq.s32.totalorder %s23, 1
      %p177 = por %p175, %p176
      %p178 = scmp.ne.s32.totalorder %s167, %s168
      %p179 = scmp.eq.s32.totalorder %s23, 0
      %p180 = por %p178, %p179
      %p181 = scmp.ne.s32.totalorder %s167, %s168
      %p182 = scmp.eq.s32.totalorder %s24, 1
      %p183 = por %p181, %p182
      %p185 = scmp.ne.s32.totalorder %s168, %s184
      %p186 = scmp.eq.s32.totalorder %s24, 0
      %p187 = por %p185, %p186
      %s188 = ssub.s32 %s18, %s25
      %p189 = scmp.eq.s32.totalorder %s188, 0
      %s191 = sadd.s32 %s190, 1
      %s192 = scalar_select %p189, %s190, %s191
      %p195 = pneg %p189
      %p196 = scmp.eq.s32.totalorder %s18, 1
      %p197 = por %p195, %p196
      %p198 = scmp.ne.s32.totalorder %s190, %s193
      %p199 = scmp.eq.s32.totalorder %s18, 0
      %p200 = por %p198, %p199
      %p201 = scmp.ne.s32.totalorder %s190, %s193
      %p202 = scmp.eq.s32.totalorder %s23, 1
      %p203 = por %p201, %p202
      %p204 = scmp.ne.s32.totalorder %s193, %s194
      %p205 = scmp.eq.s32.totalorder %s23, 0
      %p206 = por %p204, %p205
      %p207 = scmp.ne.s32.totalorder %s193, %s194
      %p208 = scmp.eq.s32.totalorder %s24, 1
      %p209 = por %p207, %p208
      %p211 = scmp.ne.s32.totalorder %s194, %s210
      %p212 = scmp.eq.s32.totalorder %s24, 0
      %p213 = por %p211, %p212
      %s214 = ssub.s32 %s18, %s25
      %p215 = scmp.eq.s32.totalorder %s214, 0
      %s217 = sadd.s32 %s216, 1
      %s218 = scalar_select %p215, %s216, %s217
      %p221 = pneg %p215
      %p222 = scmp.eq.s32.totalorder %s18, 1
      %p223 = por %p221, %p222
      %p224 = scmp.ne.s32.totalorder %s216, %s219
      %p225 = scmp.eq.s32.totalorder %s18, 0
      %p226 = por %p224, %p225
      %p227 = scmp.ne.s32.totalorder %s216, %s219
      %p228 = scmp.eq.s32.totalorder %s23, 1
      %p229 = por %p227, %p228
      %p230 = scmp.ne.s32.totalorder %s219, %s220
      %p231 = scmp.eq.s32.totalorder %s23, 0
      %p232 = por %p230, %p231
      %p233 = scmp.ne.s32.totalorder %s219, %s220
      %p234 = scmp.eq.s32.totalorder %s24, 1
      %p235 = por %p233, %p234
      %p237 = scmp.ne.s32.totalorder %s220, %s236
      %p238 = scmp.eq.s32.totalorder %s24, 0
      %p239 = por %p237, %p238
      %s240 = ssub.s32 %s18, %s25
      %p241 = scmp.eq.s32.totalorder %s240, 0
      %s243 = sadd.s32 %s242, 1
      %s244 = scalar_select %p241, %s242, %s243
      %p247 = pneg %p241
      %p248 = scmp.eq.s32.totalorder %s18, 1
      %p249 = por %p247, %p248
      %p250 = scmp.ne.s32.totalorder %s242, %s245
      %p251 = scmp.eq.s32.totalorder %s18, 0
      %p252 = por %p250, %p251
      %p253 = scmp.ne.s32.totalorder %s242, %s245
      %p254 = scmp.eq.s32.totalorder %s23, 1
      %p255 = por %p253, %p254
      %p256 = scmp.ne.s32.totalorder %s245, %s246
      %p257 = scmp.eq.s32.totalorder %s23, 0
      %p258 = por %p256, %p257
      %p259 = scmp.ne.s32.totalorder %s245, %s246
      %p260 = scmp.eq.s32.totalorder %s24, 1
      %p261 = por %p259, %p260
      %p263 = scmp.ne.s32.totalorder %s246, %s262
      %p264 = scmp.eq.s32.totalorder %s24, 0
      %p265 = por %p263, %p264
      %s267 = sadd.s32 %s266, 1
      %p270 = scmp.eq.s32.totalorder %s18, 1
      %p271 = scmp.ne.s32.totalorder %s266, %s268
      %p272 = scmp.eq.s32.totalorder %s18, 0
      %p273 = por %p271, %p272
      %p274 = scmp.ne.s32.totalorder %s266, %s268
      %p275 = scmp.eq.s32.totalorder %s23, 1
      %p276 = por %p274, %p275
      %p277 = scmp.ne.s32.totalorder %s268, %s269
      %p278 = scmp.eq.s32.totalorder %s23, 0
      %p279 = por %p277, %p278
      %p280 = scmp.ne.s32.totalorder %s268, %s269
      %p281 = scmp.eq.s32.totalorder %s24, 1
      %p282 = por %p280, %p281
      %p284 = scmp.ne.s32.totalorder %s269, %s283
      %p285 = scmp.eq.s32.totalorder %s24, 0
      %p286 = por %p284, %p285
      %s288 = sadd.s32 %s287, 1
      %p291 = scmp.eq.s32.totalorder %s18, 1
      %p292 = scmp.ne.s32.totalorder %s287, %s289
      %p293 = scmp.eq.s32.totalorder %s18, 0
      %p294 = por %p292, %p293
      %p295 = scmp.ne.s32.totalorder %s287, %s289
      %p296 = scmp.eq.s32.totalorder %s23, 1
      %p297 = por %p295, %p296
      %p298 = scmp.ne.s32.totalorder %s289, %s290
      %p299 = scmp.eq.s32.totalorder %s23, 0
      %p300 = por %p298, %p299
      %p301 = scmp.ne.s32.totalorder %s289, %s290
      %p302 = scmp.eq.s32.totalorder %s24, 1
      %p303 = por %p301, %p302
      %p305 = scmp.ne.s32.totalorder %s290, %s304
      %p306 = scmp.eq.s32.totalorder %s24, 0
      %p307 = por %p305, %p306
      %p308 = scmp.le.s32.totalorder 1, %s18
      %p309 = scmp.lt.s32.totalorder %s18, 3
      %p310 = pnand %p308, %p309
      %p311 = pneg %p310
      // Predicated region
      $region9: #{granite_forward.1} parent=5 // pred_check
        _
      $region10: #{granite_forward.1} parent=5 // pred_check_branch
        %313 = sbr.rel (%p310) target = $region12
      $region11: #{granite_forward.1} parent=5 // pred_region
        %s314 = ssub.s32 %s18, 1
        // Predicated region
        $region13: #{granite_forward.1} parent=11 // pred_check
          %p315 = pneg %p39
        $region14: #{granite_forward.1} parent=11 // pred_check_branch
          %317 = sbr.rel (%p315) target = $region16
        $region15: #{granite_forward.1} parent=11 // pred_region
          _
        $region16: #{granite_forward.1} parent=11 // pred_fallthru
          _
        // Predicated region
        $region17: #{granite_forward.1} parent=11 // pred_check
          %p318 = pneg %p60
        $region18: #{granite_forward.1} parent=11 // pred_check_branch
          %320 = sbr.rel (%p318) target = $region20
        $region19: #{granite_forward.1} parent=11 // pred_region
          _
        $region20: #{granite_forward.1} parent=11 // pred_fallthru
          _
        // Predicated region
        $region21: #{granite_forward.1} parent=11 // pred_check
          %p321 = pneg %p81
        $region22: #{granite_forward.1} parent=11 // pred_check_branch
          %323 = sbr.rel (%p321) target = $region24
        $region23: #{granite_forward.1} parent=11 // pred_region
          _
        $region24: #{granite_forward.1} parent=11 // pred_fallthru
          _
        // Predicated region
        $region25: #{granite_forward.1} parent=11 // pred_check
          %p324 = pneg %p102
        $region26: #{granite_forward.1} parent=11 // pred_check_branch
          %326 = sbr.rel (%p324) target = $region28
        $region27: #{granite_forward.1} parent=11 // pred_region
          _
        $region28: #{granite_forward.1} parent=11 // pred_fallthru
          _
        // Predicated region
        $region29: #{granite_forward.1} parent=11 // pred_check
          %p327 = pneg %p279
        $region30: #{granite_forward.1} parent=11 // pred_check_branch
          %329 = sbr.rel (%p327) target = $region32
        $region31: #{granite_forward.1} parent=11 // pred_region
          _
        $region32: #{granite_forward.1} parent=11 // pred_fallthru
          _
      $region12: #{granite_forward.1} parent=5 // pred_fallthru
        _
      %p330 = scmp.lt.s32.totalorder %s18, 2
      // Predicated region
      $region33: #{granite_forward.1} parent=5 // pred_check
        %p331 = pneg %p330
      $region34: #{granite_forward.1} parent=5 // pred_check_branch
        %333 = sbr.rel (%p331) target = $region36
      $region35: #{granite_forward.1} parent=5 // pred_region
        // Predicated region
        $region37: #{granite_forward.1} parent=35 // pred_check
          %p334 = pneg %p122
        $region38: #{granite_forward.1} parent=35 // pred_check_branch
          %336 = sbr.rel (%p334) target = $region40
        $region39: #{granite_forward.1} parent=35 // pred_region
          %p337 = scmp.lt.s32.totalorder %s18, 1
          %s338 = scalar_select %p337, %s18, 1
          %s339 = scalar_lea.vmem %s4, %s338
        $region40: #{granite_forward.1} parent=35 // pred_fallthru
          _
        // Predicated region
        $region41: #{granite_forward.1} parent=35 // pred_check
          %p340 = pneg %p148
        $region42: #{granite_forward.1} parent=35 // pred_check_branch
          %342 = sbr.rel (%p340) target = $region44
        $region43: #{granite_forward.1} parent=35 // pred_region
          %p343 = scmp.lt.s32.totalorder %s18, 1
          %s344 = scalar_select %p343, %s18, 1
          %s345 = scalar_lea.vmem %s5, %s344
        $region44: #{granite_forward.1} parent=35 // pred_fallthru
          _
        // Predicated region
        $region45: #{granite_forward.1} parent=35 // pred_check
          %p346 = pneg %p174
        $region46: #{granite_forward.1} parent=35 // pred_check_branch
          %348 = sbr.rel (%p346) target = $region48
        $region47: #{granite_forward.1} parent=35 // pred_region
          %p349 = scmp.lt.s32.totalorder %s18, 1
          %s350 = scalar_select %p349, %s18, 1
          %s351 = smul.addr %s350, 4
          %s352 = smul.addr %s351, 8
          %s353 = scalar_lea.vmem %s6, %s352
        $region48: #{granite_forward.1} parent=35 // pred_fallthru
          _
        // Predicated region
        $region49: #{granite_forward.1} parent=35 // pred_check
          %p354 = pneg %p200
        $region50: #{granite_forward.1} parent=35 // pred_check_branch
          %356 = sbr.rel (%p354) target = $region52
        $region51: #{granite_forward.1} parent=35 // pred_region
          %p357 = scmp.lt.s32.totalorder %s18, 1
          %s358 = scalar_select %p357, %s18, 1
          %s359 = smul.addr %s358, 4
          %s360 = smul.addr %s359, 8
          %s361 = scalar_lea.vmem %s7, %s360
        $region52: #{granite_forward.1} parent=35 // pred_fallthru
          _
        // Predicated region
        $region53: #{granite_forward.1} parent=35 // pred_check
          %p362 = pneg %p226
        $region54: #{granite_forward.1} parent=35 // pred_check_branch
          %364 = sbr.rel (%p362) target = $region56
        $region55: #{granite_forward.1} parent=35 // pred_region
          %p365 = scmp.lt.s32.totalorder %s18, 1
          %s366 = scalar_select %p365, %s18, 1
          %s367 = smul.addr %s366, 4
          %s368 = smul.addr %s367, 8
          %s369 = scalar_lea.vmem %s8, %s368
        $region56: #{granite_forward.1} parent=35 // pred_fallthru
          _
        // Predicated region
        $region57: #{granite_forward.1} parent=35 // pred_check
          %p370 = pneg %p252
        $region58: #{granite_forward.1} parent=35 // pred_check_branch
          %372 = sbr.rel (%p370) target = $region60
        $region59: #{granite_forward.1} parent=35 // pred_region
          %p373 = scmp.lt.s32.totalorder %s18, 1
          %s374 = scalar_select %p373, %s18, 1
          %s375 = smul.addr %s374, 8
          %s376 = smul.addr %s375, 8
          %s377 = scalar_lea.vmem %s9, %s376
        $region60: #{granite_forward.1} parent=35 // pred_fallthru
          _
      $region36: #{granite_forward.1} parent=5 // pred_fallthru
        _
      %p378 = scmp.le.s32.totalorder 1, %s18
      %p379 = scmp.lt.s32.totalorder %s18, 3
      %p380 = pnand %p378, %p379
      %p381 = pneg %p380
      // Predicated region
      $region61: #{granite_forward.1} parent=5 // pred_check
        _
      $region62: #{granite_forward.1} parent=5 // pred_check_branch
        %383 = sbr.rel (%p380) target = $region64
      $region63: #{granite_forward.1} parent=5 // pred_region
        %s384 = ssub.s32 %s18, 1
        %p385 = pneg %p39
        %p386 = pneg %p36
        %p387 = pneg %p60
        %p388 = pneg %p57
        %p389 = pneg %p81
        %p390 = pneg %p78
        %p391 = pneg %p102
        %p392 = pneg %p99
        %p393 = scmp.lt.s32.totalorder %s23, 1
        %s394 = scalar_select %p393, %s23, 1
        %s395 = scalar_lea.vmem %s4, %s394
        %p396 = pneg %p128
        %p397 = pneg %p125
        %p398 = scmp.lt.s32.totalorder %s23, 1
        %s399 = scalar_select %p398, %s23, 1
        %s400 = scalar_lea.vmem %s5, %s399
        %p401 = pneg %p154
        %p402 = pneg %p151
        %p403 = scmp.lt.s32.totalorder %s23, 1
        %s404 = scalar_select %p403, %s23, 1
        %s405 = smul.addr %s404, 4
        %s406 = smul.addr %s405, 8
        %s407 = scalar_lea.vmem %s6, %s406
        %p408 = pneg %p180
        %p409 = pneg %p177
        %p410 = scmp.lt.s32.totalorder %s23, 1
        %s411 = scalar_select %p410, %s23, 1
        %s412 = smul.addr %s411, 4
        %s413 = smul.addr %s412, 8
        %s414 = scalar_lea.vmem %s7, %s413
        %p415 = pneg %p206
        %p416 = pneg %p203
        %p417 = scmp.lt.s32.totalorder %s23, 1
        %s418 = scalar_select %p417, %s23, 1
        %s419 = smul.addr %s418, 4
        %s420 = smul.addr %s419, 8
        %s421 = scalar_lea.vmem %s8, %s420
        %p422 = pneg %p232
        %p423 = pneg %p229
        %p424 = scmp.lt.s32.totalorder %s23, 1
        %s425 = scalar_select %p424, %s23, 1
        %s426 = smul.addr %s425, 8
        %s427 = smul.addr %s426, 8
        %s428 = scalar_lea.vmem %s9, %s427
        %p429 = pneg %p258
        %p430 = pneg %p255
        %p431 = pneg %p279
        %p432 = pneg %p276
        %p433 = pneg %p300
        %p434 = pneg %p297
        %p435 = scmp.lt.s32.totalorder %s23, 1
        %s436 = scalar_select %p435, %s23, 1
        %s437 = scalar_lea.vmem %s4, %s436
        %p438 = scmp.lt.s32.totalorder %s23, 1
        %s439 = scalar_select %p438, %s23, 1
        %s440 = scalar_lea.vmem %s5, %s439
        %p441 = scmp.lt.s32.totalorder %s23, 1
        %s442 = scalar_select %p441, %s23, 1
        %s443 = smul.addr %s442, 4
        %s444 = smul.addr %s443, 8
        %s445 = scalar_lea.vmem %s6, %s444
        %p446 = scmp.lt.s32.totalorder %s23, 1
        %s447 = scalar_select %p446, %s23, 1
        %s448 = smul.addr %s447, 4
        %s449 = smul.addr %s448, 8
        %s450 = scalar_lea.vmem %s7, %s449
        %p451 = scmp.lt.s32.totalorder %s23, 1
        %s452 = scalar_select %p451, %s23, 1
        %s453 = smul.addr %s452, 4
        %s454 = smul.addr %s453, 8
        %s455 = scalar_lea.vmem %s8, %s454
        %p456 = scmp.lt.s32.totalorder %s23, 1
        %s457 = scalar_select %p456, %s23, 1
        %s458 = smul.addr %s457, 8
        %s459 = smul.addr %s458, 8
        %s460 = scalar_lea.vmem %s9, %s459
        %p461 = scmp.eq.s32.totalorder %s23, 0
        // Predicated region
        $region65: #{granite_forward.1} parent=63 // pred_check
          %p462 = pneg %p461
        $region66: #{granite_forward.1} parent=63 // pred_check_branch
          %464 = sbr.rel (%p462) target = $region68
        $region67: #{granite_forward.1} parent=63 // pred_region
          %v465 = vld [vmem:[%s0] sm:$0xff]
          %vm466 = vcmask 261120
          %467 = vst.msk [vmem:[#allocation2] sm:$0xff] %vm466, %v465
          %468 = vst.msk [vmem:[#allocation3] sm:$0xff] %vm466, 0.0
        $region68: #{granite_forward.1} parent=63 // pred_fallthru
          _
        %v469 = vld [vmem:[#allocation2] sm:$0xff]
        %v470 = vld [vmem:[#allocation3] sm:$0xff]
        %v471 = vadd.f32 %v469, %v470
        %v472 = vld [vmem:[%s437] sm:$0x1]
        %v473 = vmul.f32 %v471, %v471
        %vm474 = vcmask 261120
        %v475 = vsel %vm474, %v473, 0.0
        %476 = vadd.xlane.f32.xlu0 %v475
        %v477 = vpop.xlane.xlu0 %476
        %v478 = vrcp.pop 32.0
        %v479 = vmul.f32 32.0, %v478
        %v480 = vsub.f32 1.0, %v479
        %v481 = vmul.f32 %v478, %v480
        %v482 = vadd.f32 %v478, %v481
        %vm483 = vweird.f32 %v478
        %v484 = vsel %vm483, %v478, %v482
        %v485 = vmul.f32 %v477, %v484
        %v486 = vadd.f32 %v485, 1e-06
        %v487 = vrsqrt.pop %v486
        %v488 = vmul.f32 %v487, %v486
        %v489 = vmul.f32 %v488, %v487
        %v490 = vmul.f32 0.5, %v489
        %v491 = vsub.f32 1.5, %v490
        %v492 = vmul.f32 %v487, %v491
        %vm493 = vweird.f32 %v486
        %vm494 = vweird.f32 %v487
        %vm495 = vmor %vm493, %vm494
        %v496 = vsel %vm495, %v487, %v492
        %v497 = vmul.f32 %v471, %v496
        %v499 = vperm.slane %v472, 0
        %v501 = vmul.f32 %v497, %v499
        %v502 = vld [vmem:[%s445] sm:$0xff]
        %v503 = vld [vmem:[%s445 + $0x8] sm:$0xff]
        %v504 = vld [vmem:[%s445 + $0x10] sm:$0xff]
        %v505 = vld [vmem:[%s445 + $0x18] sm:$0xff]
        %v507 = vsel %vm474, %v501, 0
        %509 = vmatpush.msra.mxu0 0.0
        %510 = vmatpush.msra.mxu0 0.0
        %511 = vmatpush.msra.mxu0 0.0
        %512 = vmatpush.msra.mxu0 0.0
        %513 = vmatpush.msra.mxu0 0.0
        %514 = vmatpush.msra.mxu0 0.0
        %515 = vmatpush.msra.mxu0 0.0
        %516 = vmatpush.msra.mxu0 0.0
        %517 = vmatpush.msra.mxu0 0.0
        %518 = vmatpush.msra.mxu0 0.0
        %519 = vmatpush.msra.mxu0 0.0
        %520 = vmatpush.msra.mxu0 0.0
        %521 = vmatpush.msra.mxu0 %v505
        %522 = vmatpush.msra.mxu0 %v504
        %523 = vmatpush.msra.mxu0 %v503
        %524 = vmatpush.msra.mxu0 %v502
        %525 = vmatmul.f32.gmra.mxu0 %v507
        %v526 = vpop.f32.mrf.mxu0
        %v527 = vadd.f32 0.0, %v526
        %528 = vdwg.mxu0
        %530 = vrot.lane.b32.xlu0 %v527, 120
        %v531 = vpop.permute.xlu0 %530
        %533 = vrot.lane.b32.xlu0 %v527, 112
        %v534 = vpop.permute.xlu0 %533
        %535 = vrot.lane.b32.xlu0 %v531, 112
        %v536 = vpop.permute.xlu0 %535
        %v539 = vld [vmem:[%s1] sm:$0xff]
        %v540 = vld [vmem:[%s1 + $0x8] sm:$0xff]
        %v541 = vld [vmem:[%s2] sm:$0xff]
        %v542 = vld [vmem:[%s2 + $0x8] sm:$0xff]
        %v543 = vmul.f32 %v527, %v539
        %v544 = vmul.f32 %v531, %v540
        %v545 = vmul.f32 %v534, %v539
        %v546 = vmul.f32 %v536, %v540
        %547 = vrot.lane.b32.xlu0 %v527, 124
        %v548 = vpop.permute.xlu0 %547
        %549 = vrot.lane.b32.xlu0 %v531, 124
        %v550 = vpop.permute.xlu0 %549
        %551 = vrot.lane.b32.xlu0 %v534, 124
        %v552 = vpop.permute.xlu0 %551
        %553 = vrot.lane.b32.xlu0 %v536, 124
        %v554 = vpop.permute.xlu0 %553
        %559 = vrot.lane.b32.xlu0 %v527, 4
        %v560 = vpop.permute.xlu0 %559
        %561 = vrot.lane.b32.xlu0 %v531, 4
        %v562 = vpop.permute.xlu0 %561
        %563 = vrot.lane.b32.xlu0 %v534, 4
        %v564 = vpop.permute.xlu0 %563
        %565 = vrot.lane.b32.xlu0 %v536, 4
        %v566 = vpop.permute.xlu0 %565
        %vm571 = vcmask 31744
        %v572 = vsel %vm571, %v548, %v560
        %v573 = vsel %vm571, %v550, %v562
        %v574 = vsel %vm571, %v552, %v564
        %v575 = vsel %vm571, %v554, %v566
        %v576 = vmul.f32 %v572, %v541
        %v577 = vmul.f32 %v573, %v542
        %v578 = vmul.f32 %v574, %v541
        %v579 = vmul.f32 %v575, %v542
        %v580 = vadd.f32 %v543, %v576
        %v581 = vadd.f32 %v544, %v577
        %v582 = vadd.f32 %v545, %v578
        %v583 = vadd.f32 %v546, %v579
        %585 = vrot.lane.b32.xlu0 %v539, 32
        %v586 = vpop.permute.xlu0 %585
        %v588 = vmul.f32 %v527, %v586
        %v589 = vmul.f32 %v531, %v586
        %590 = vrot.lane.b32.xlu0 %v527, 92
        %v591 = vpop.permute.xlu0 %590
        %592 = vrot.lane.b32.xlu0 %v531, 92
        %v593 = vpop.permute.xlu0 %592
        %596 = vrot.lane.b32.xlu0 %v527, 100
        %v597 = vpop.permute.xlu0 %596
        %598 = vrot.lane.b32.xlu0 %v531, 100
        %v599 = vpop.permute.xlu0 %598
        %v602 = vsel %vm571, %v591, %v597
        %v603 = vsel %vm571, %v593, %v599
        %v604 = vmul.f32 %v602, %v541
        %v605 = vmul.f32 %v603, %v541
        %608 = vrot.lane.b32.xlu0 %v604, 32
        %v609 = vpop.permute.xlu0 %608
        %610 = vrot.lane.b32.xlu0 %v605, 32
        %v611 = vpop.permute.xlu0 %610
        %v614 = vadd.f32 %v588, %v609
        %v615 = vadd.f32 %v589, %v611
        %v616 = vld [vmem:[%s3] sm:$0xff]
        %v617 = vld [vmem:[%s3 + $0x8] sm:$0xff]
        %619 = vrot.lane.b32.xlu0 %v614, 96
        %v620 = vpop.permute.xlu0 %619
        %vm621 = vcmask 64512
        %v623 = vsel %vm621, %v580, 0
        %v626 = vsel %vm621, %v581, 0
        %v628 = vsel %vm621, %v620, 0
        %630 = vmatpush.xpose.msra.mxu0 0.0
        %631 = vmatpush.xpose.msra.mxu0 0.0
        %632 = vmatpush.xpose.msra.mxu0 0.0
        %633 = vmatpush.xpose.msra.mxu0 0.0
        %634 = vmatpush.xpose.msra.mxu0 0.0
        %635 = vmatpush.xpose.msra.mxu0 0.0
        %636 = vmatpush.xpose.msra.mxu0 0.0
        %637 = vmatpush.xpose.msra.mxu0 0.0
        %638 = vmatpush.xpose.msra.mxu0 0.0
        %639 = vmatpush.xpose.msra.mxu0 0.0
        %640 = vmatpush.xpose.msra.mxu0 0.0
        %641 = vmatpush.xpose.msra.mxu0 0.0
        %642 = vmatpush.xpose.msra.mxu0 0.0
        %643 = vmatpush.xpose.msra.mxu0 0.0
        %644 = vmatpush.xpose.msra.mxu0 0.0
        %645 = vmatpush.xpose.msra.mxu0 %v628
        %646 = vmatmul.f32.gmra.mxu0 %v623
        %v647 = vpop.f32.mrf.mxu0
        %v648 = vadd.f32 %v616, %v647
        %649 = vmatmul.f32.gmra.mxu0 %v626
        %v650 = vpop.f32.mrf.mxu0
        %v651 = vadd.f32 %v617, %v650
        %652 = vdwg.mxu0
        %654 = vrot.lane.b32.xlu0 %v615, 96
        %v655 = vpop.permute.xlu0 %654
        %v657 = vsel %vm621, %v582, 0
        %v660 = vsel %vm621, %v583, 0
        %v662 = vsel %vm621, %v655, 0
        %664 = vmatpush.xpose.msra.mxu0 0.0
        %665 = vmatpush.xpose.msra.mxu0 0.0
        %666 = vmatpush.xpose.msra.mxu0 0.0
        %667 = vmatpush.xpose.msra.mxu0 0.0
        %668 = vmatpush.xpose.msra.mxu0 0.0
        %669 = vmatpush.xpose.msra.mxu0 0.0
        %670 = vmatpush.xpose.msra.mxu0 0.0
        %671 = vmatpush.xpose.msra.mxu0 0.0
        %672 = vmatpush.xpose.msra.mxu0 0.0
        %673 = vmatpush.xpose.msra.mxu0 0.0
        %674 = vmatpush.xpose.msra.mxu0 0.0
        %675 = vmatpush.xpose.msra.mxu0 0.0
        %676 = vmatpush.xpose.msra.mxu0 0.0
        %677 = vmatpush.xpose.msra.mxu0 0.0
        %678 = vmatpush.xpose.msra.mxu0 0.0
        %679 = vmatpush.xpose.msra.mxu0 %v662
        %680 = vmatmul.f32.gmra.mxu0 %v657
        %v681 = vpop.f32.mrf.mxu0
        %v682 = vadd.f32 %v616, %v681
        %683 = vmatmul.f32.gmra.mxu0 %v660
        %v684 = vpop.f32.mrf.mxu0
        %v685 = vadd.f32 %v617, %v684
        %686 = vdwg.mxu0
        %v687 = vsel %vm621, %v648, -inf
        %688 = vmax.xlane.f32.xlu0 %v687
        %v689 = vpop.xlane.xlu0 %688
        %v690 = vsel %vm621, %v651, -inf
        %691 = vmax.xlane.f32.xlu0 %v690
        %v692 = vpop.xlane.xlu0 %691
        %v693 = vsel %vm621, %v682, -inf
        %694 = vmax.xlane.f32.xlu0 %v693
        %v695 = vpop.xlane.xlu0 %694
        %v696 = vsel %vm621, %v685, -inf
        %697 = vmax.xlane.f32.xlu0 %v696
        %v698 = vpop.xlane.xlu0 %697
        %v699 = vsub.f32 %v648, %v689
        %v700 = vsub.f32 %v651, %v692
        %v701 = vsub.f32 %v682, %v695
        %v702 = vsub.f32 %v685, %v698
        %v703 = vmul.f32 %v699, 1.442695
        %v704 = vpow.pop %v703
        %v705 = vmul.f32 %v700, 1.442695
        %v706 = vpow.pop %v705
        %v707 = vmul.f32 %v701, 1.442695
        %v708 = vpow.pop %v707
        %v709 = vmul.f32 %v702, 1.442695
        %v710 = vpow.pop %v709
        %v711 = vsel %vm621, %v704, 0.0
        %712 = vadd.xlane.f32.xlu0 %v711
        %v713 = vpop.xlane.xlu0 %712
        %v714 = vsel %vm621, %v706, 0.0
        %715 = vadd.xlane.f32.xlu0 %v714
        %v716 = vpop.xlane.xlu0 %715
        %v717 = vsel %vm621, %v708, 0.0
        %718 = vadd.xlane.f32.xlu0 %v717
        %v719 = vpop.xlane.xlu0 %718
        %v720 = vsel %vm621, %v710, 0.0
        %721 = vadd.xlane.f32.xlu0 %v720
        %v722 = vpop.xlane.xlu0 %721
        %v723 = vrcp.pop %v713
        %v724 = vmul.f32 %v713, %v723
        %v725 = vsub.f32 1.0, %v724
        %v726 = vmul.f32 %v723, %v725
        %v727 = vadd.f32 %v723, %v726
        %vm728 = vweird.f32 %v713
        %vm729 = vweird.f32 %v723
        %vm730 = vmor %vm728, %vm729
        %v731 = vsel %vm730, %v723, %v727
        %v732 = vand.u32 2147483647, %v713
        %vm733 = vcmp.eq.f32.partialorder %v732, 8.507059e+37
        %v734 = vand.u32 %v713, 2147483648
        %v735 = vor.u32 1.1754944e-38, %v734
        %v736 = vsel %vm733, %v735, %v731
        %v737 = vmul.f32 %v704, %v736
        %v738 = vrcp.pop %v716
        %v739 = vmul.f32 %v716, %v738
        %v740 = vsub.f32 1.0, %v739
        %v741 = vmul.f32 %v738, %v740
        %v742 = vadd.f32 %v738, %v741
        %vm743 = vweird.f32 %v716
        %vm744 = vweird.f32 %v738
        %vm745 = vmor %vm743, %vm744
        %v746 = vsel %vm745, %v738, %v742
        %v747 = vand.u32 2147483647, %v716
        %vm748 = vcmp.eq.f32.partialorder %v747, 8.507059e+37
        %v749 = vand.u32 %v716, 2147483648
        %v750 = vor.u32 1.1754944e-38, %v749
        %v751 = vsel %vm748, %v750, %v746
        %v752 = vmul.f32 %v706, %v751
        %v753 = vrcp.pop %v719
        %v754 = vmul.f32 %v719, %v753
        %v755 = vsub.f32 1.0, %v754
        %v756 = vmul.f32 %v753, %v755
        %v757 = vadd.f32 %v753, %v756
        %vm758 = vweird.f32 %v719
        %vm759 = vweird.f32 %v753
        %vm760 = vmor %vm758, %vm759
        %v761 = vsel %vm760, %v753, %v757
        %v762 = vand.u32 2147483647, %v719
        %vm763 = vcmp.eq.f32.partialorder %v762, 8.507059e+37
        %v764 = vand.u32 %v719, 2147483648
        %v765 = vor.u32 1.1754944e-38, %v764
        %v766 = vsel %vm763, %v765, %v761
        %v767 = vmul.f32 %v708, %v766
        %v768 = vrcp.pop %v722
        %v769 = vmul.f32 %v722, %v768
        %v770 = vsub.f32 1.0, %v769
        %v771 = vmul.f32 %v768, %v770
        %v772 = vadd.f32 %v768, %v771
        %vm773 = vweird.f32 %v722
        %vm774 = vweird.f32 %v768
        %vm775 = vmor %vm773, %vm774
        %v776 = vsel %vm775, %v768, %v772
        %v777 = vand.u32 2147483647, %v722
        %vm778 = vcmp.eq.f32.partialorder %v777, 8.507059e+37
        %v779 = vand.u32 %v722, 2147483648
        %v780 = vor.u32 1.1754944e-38, %v779
        %v781 = vsel %vm778, %v780, %v776
        %v782 = vmul.f32 %v710, %v781
        %783 = vrot.lane.b32.xlu0 %v527, 80
        %v784 = vpop.permute.xlu0 %783
        %v787 = vsel %vm621, %v737, 0
        %v790 = vsel %vm621, %v752, 0
        %792 = vmatpush.msra.mxu0 0.0
        %793 = vmatpush.msra.mxu0 0.0
        %794 = vmatpush.msra.mxu0 0.0
        %795 = vmatpush.msra.mxu0 0.0
        %796 = vmatpush.msra.mxu0 0.0
        %797 = vmatpush.msra.mxu0 0.0
        %798 = vmatpush.msra.mxu0 0.0
        %799 = vmatpush.msra.mxu0 0.0
        %800 = vmatpush.msra.mxu0 0.0
        %801 = vmatpush.msra.mxu0 0.0
        %802 = vmatpush.msra.mxu0 0.0
        %803 = vmatpush.msra.mxu0 0.0
        %804 = vmatpush.msra.mxu0 0.0
        %805 = vmatpush.msra.mxu0 0.0
        %806 = vmatpush.msra.mxu0 0.0
        %807 = vmatpush.msra.mxu0 %v784
        %808 = vmatmul.f32.gmra.mxu0 %v787
        %v809 = vpop.f32.mrf.mxu0
        %v810 = vadd.f32 0.0, %v809
        %811 = vmatmul.f32.gmra.mxu0 %v790
        %v812 = vpop.f32.mrf.mxu0
        %v813 = vadd.f32 0.0, %v812
        %814 = vdwg.mxu0
        %815 = vrot.lane.b32.xlu0 %v531, 80
        %v816 = vpop.permute.xlu0 %815
        %v819 = vsel %vm621, %v767, 0
        %v822 = vsel %vm621, %v782, 0
        %824 = vmatpush.msra.mxu0 0.0
        %825 = vmatpush.msra.mxu0 0.0
        %826 = vmatpush.msra.mxu0 0.0
        %827 = vmatpush.msra.mxu0 0.0
        %828 = vmatpush.msra.mxu0 0.0
        %829 = vmatpush.msra.mxu0 0.0
        %830 = vmatpush.msra.mxu0 0.0
        %831 = vmatpush.msra.mxu0 0.0
        %832 = vmatpush.msra.mxu0 0.0
        %833 = vmatpush.msra.mxu0 0.0
        %834 = vmatpush.msra.mxu0 0.0
        %835 = vmatpush.msra.mxu0 0.0
        %836 = vmatpush.msra.mxu0 0.0
        %837 = vmatpush.msra.mxu0 0.0
        %838 = vmatpush.msra.mxu0 0.0
        %839 = vmatpush.msra.mxu0 %v816
        %840 = vmatmul.f32.gmra.mxu0 %v819
        %v841 = vpop.f32.mrf.mxu0
        %v842 = vadd.f32 0.0, %v841
        %843 = vmatmul.f32.gmra.mxu0 %v822
        %v844 = vpop.f32.mrf.mxu0
        %v845 = vadd.f32 0.0, %v844
        %846 = vdwg.mxu0
        %v847 = vld [vmem:[%s450] sm:$0xff]
        %v848 = vld [vmem:[%s450 + $0x8] sm:$0xff]
        %v849 = vld [vmem:[%s450 + $0x10] sm:$0xff]
        %v850 = vld [vmem:[%s450 + $0x18] sm:$0xff]
        %v852 = vsel %vm621, %v810, 0
        %854 = vmatpush.msra.mxu0 0.0
        %855 = vmatpush.msra.mxu0 0.0
        %856 = vmatpush.msra.mxu0 0.0
        %857 = vmatpush.msra.mxu0 0.0
        %858 = vmatpush.msra.mxu0 0.0
        %859 = vmatpush.msra.mxu0 0.0
        %860 = vmatpush.msra.mxu0 0.0
        %861 = vmatpush.msra.mxu0 0.0
        %862 = vmatpush.msra.mxu0 0.0
        %863 = vmatpush.msra.mxu0 0.0
        %864 = vmatpush.msra.mxu0 0.0
        %865 = vmatpush.msra.mxu0 0.0
        %866 = vmatpush.msra.mxu0 0.0
        %867 = vmatpush.msra.mxu0 0.0
        %868 = vmatpush.msra.mxu0 0.0
        %869 = vmatpush.msra.mxu0 %v847
        %870 = vmatmul.f32.gmra.mxu0 %v852
        %v871 = vpop.f32.mrf.mxu0
        %v872 = vadd.f32 0.0, %v871
        %873 = vdwg.mxu0
        %v875 = vsel %vm621, %v813, 0
        %877 = vmatpush.msra.mxu0 0.0
        %878 = vmatpush.msra.mxu0 0.0
        %879 = vmatpush.msra.mxu0 0.0
        %880 = vmatpush.msra.mxu0 0.0
        %881 = vmatpush.msra.mxu0 0.0
        %882 = vmatpush.msra.mxu0 0.0
        %883 = vmatpush.msra.mxu0 0.0
        %884 = vmatpush.msra.mxu0 0.0
        %885 = vmatpush.msra.mxu0 0.0
        %886 = vmatpush.msra.mxu0 0.0
        %887 = vmatpush.msra.mxu0 0.0
        %888 = vmatpush.msra.mxu0 0.0
        %889 = vmatpush.msra.mxu0 0.0
        %890 = vmatpush.msra.mxu0 0.0
        %891 = vmatpush.msra.mxu0 0.0
        %892 = vmatpush.msra.mxu0 %v848
        %893 = vmatmul.f32.gmra.mxu0 %v875
        %v894 = vpop.f32.mrf.mxu0
        %v895 = vadd.f32 0.0, %v894
        %896 = vdwg.mxu0
        %v898 = vsel %vm621, %v842, 0
        %900 = vmatpush.msra.mxu0 0.0
        %901 = vmatpush.msra.mxu0 0.0
        %902 = vmatpush.msra.mxu0 0.0
        %903 = vmatpush.msra.mxu0 0.0
        %904 = vmatpush.msra.mxu0 0.0
        %905 = vmatpush.msra.mxu0 0.0
        %906 = vmatpush.msra.mxu0 0.0
        %907 = vmatpush.msra.mxu0 0.0
        %908 = vmatpush.msra.mxu0 0.0
        %909 = vmatpush.msra.mxu0 0.0
        %910 = vmatpush.msra.mxu0 0.0
        %911 = vmatpush.msra.mxu0 0.0
        %912 = vmatpush.msra.mxu0 0.0
        %913 = vmatpush.msra.mxu0 0.0
        %914 = vmatpush.msra.mxu0 0.0
        %915 = vmatpush.msra.mxu0 %v849
        %916 = vmatmul.f32.gmra.mxu0 %v898
        %v917 = vpop.f32.mrf.mxu0
        %v918 = vadd.f32 0.0, %v917
        %919 = vdwg.mxu0
        %v921 = vsel %vm621, %v845, 0
        %923 = vmatpush.msra.mxu0 0.0
        %924 = vmatpush.msra.mxu0 0.0
        %925 = vmatpush.msra.mxu0 0.0
        %926 = vmatpush.msra.mxu0 0.0
        %927 = vmatpush.msra.mxu0 0.0
        %928 = vmatpush.msra.mxu0 0.0
        %929 = vmatpush.msra.mxu0 0.0
        %930 = vmatpush.msra.mxu0 0.0
        %931 = vmatpush.msra.mxu0 0.0
        %932 = vmatpush.msra.mxu0 0.0
        %933 = vmatpush.msra.mxu0 0.0
        %934 = vmatpush.msra.mxu0 0.0
        %935 = vmatpush.msra.mxu0 0.0
        %936 = vmatpush.msra.mxu0 0.0
        %937 = vmatpush.msra.mxu0 0.0
        %938 = vmatpush.msra.mxu0 %v850
        %939 = vmatmul.f32.gmra.mxu0 %v921
        %v940 = vpop.f32.mrf.mxu0
        %v941 = vadd.f32 0.0, %v940
        %942 = vdwg.mxu0
        %v943 = vsel %vm474, %v872, 0.0
        %v944 = vsel %vm474, %v895, 0.0
        %v945 = vadd.f32 %v943, %v944
        %v946 = vsel %vm474, %v918, 0.0
        %v947 = vadd.f32 %v945, %v946
        %v948 = vsel %vm474, %v941, 0.0
        %v949 = vadd.f32 %v947, %v948
        %v950 = vadd.f32 %v949, %v471
        %v951 = vld [vmem:[%s440] sm:$0x1]
        %v952 = vmul.f32 %v950, %v950
        %v953 = vsel %vm474, %v952, 0.0
        %954 = vadd.xlane.f32.xlu0 %v953
        %v955 = vpop.xlane.xlu0 %954
        %v956 = vmul.f32 %v955, %v484
        %v957 = vadd.f32 %v956, 1e-06
        %v958 = vrsqrt.pop %v957
        %v959 = vmul.f32 %v958, %v957
        %v960 = vmul.f32 %v959, %v958
        %v961 = vmul.f32 0.5, %v960
        %v962 = vsub.f32 1.5, %v961
        %v963 = vmul.f32 %v958, %v962
        %vm964 = vweird.f32 %v957
        %vm965 = vweird.f32 %v958
        %vm966 = vmor %vm964, %vm965
        %v967 = vsel %vm966, %v958, %v963
        %v968 = vmul.f32 %v950, %v967
        %v970 = vperm.slane %v951, 0
        %v972 = vmul.f32 %v968, %v970
        %v973 = vld [vmem:[%s455] sm:$0xff]
        %v974 = vld [vmem:[%s455 + $0x8] sm:$0xff]
        %v975 = vld [vmem:[%s455 + $0x10] sm:$0xff]
        %v976 = vld [vmem:[%s455 + $0x18] sm:$0xff]
        %v978 = vsel %vm474, %v972, 0
        %980 = vmatpush.msra.mxu0 0.0
        %981 = vmatpush.msra.mxu0 0.0
        %982 = vmatpush.msra.mxu0 0.0
        %983 = vmatpush.msra.mxu0 0.0
        %984 = vmatpush.msra.mxu0 0.0
        %985 = vmatpush.msra.mxu0 0.0
        %986 = vmatpush.msra.mxu0 0.0
        %987 = vmatpush.msra.mxu0 0.0
        %988 = vmatpush.msra.mxu0 0.0
        %989 = vmatpush.msra.mxu0 0.0
        %990 = vmatpush.msra.mxu0 0.0
        %991 = vmatpush.msra.mxu0 0.0
        %992 = vmatpush.msra.mxu0 %v976
        %993 = vmatpush.msra.mxu0 %v975
        %994 = vmatpush.msra.mxu0 %v974
        %995 = vmatpush.msra.mxu0 %v973
        %996 = vmatmul.f32.gmra.mxu0 %v978
        %v997 = vpop.f32.mrf.mxu0
        %v998 = vadd.f32 0.0, %v997
        %999 = vdwg.mxu0
        %v1000 = vxor.u32 %v998, 2147483648
        %v1001 = vmul.f32 %v1000, 1.442695
        %v1002 = vpow.pop %v1001
        %v1003 = vadd.f32 %v1002, 1.0
        %v1004 = vrcp.pop %v1003
        %v1005 = vmul.f32 %v1003, %v1004
        %v1006 = vsub.f32 1.0, %v1005
        %v1007 = vmul.f32 %v1004, %v1006
        %v1008 = vadd.f32 %v1004, %v1007
        %vm1009 = vweird.f32 %v1003
        %vm1010 = vweird.f32 %v1004
        %vm1011 = vmor %vm1009, %vm1010
        %v1012 = vsel %vm1011, %v1004, %v1008
        %v1013 = vand.u32 2147483647, %v1003
        %vm1014 = vcmp.eq.f32.partialorder %v1013, 8.507059e+37
        %v1015 = vand.u32 %v1003, 2147483648
        %v1016 = vor.u32 1.1754944e-38, %v1015
        %v1017 = vsel %vm1014, %v1016, %v1012
        %v1018 = vmul.f32 1.0, %v1017
        %v1019 = vmul.f32 %v998, %v1018
        %1021 = vrot.lane.b32.xlu0 %v998, 64
        %v1022 = vpop.permute.xlu0 %1021
        %v1024 = vmul.f32 %v1019, %v1022
        %v1025 = vld [vmem:[%s460] sm:$0xff]
        %v1026 = vld [vmem:[%s460 + $0x8] sm:$0xff]
        %v1027 = vld [vmem:[%s460 + $0x10] sm:$0xff]
        %v1028 = vld [vmem:[%s460 + $0x18] sm:$0xff]
        %v1029 = vld [vmem:[%s460 + $0x20] sm:$0xff]
        %v1030 = vld [vmem:[%s460 + $0x28] sm:$0xff]
        %v1031 = vld [vmem:[%s460 + $0x30] sm:$0xff]
        %v1032 = vld [vmem:[%s460 + $0x38] sm:$0xff]
        %vm1033 = vcmask 523264
        %v1035 = vsel %vm1033, %v1024, 0
        %1037 = vmatpush.msra.mxu0 0.0
        %1038 = vmatpush.msra.mxu0 0.0
        %1039 = vmatpush.msra.mxu0 0.0
        %1040 = vmatpush.msra.mxu0 0.0
        %1041 = vmatpush.msra.mxu0 0.0
        %1042 = vmatpush.msra.mxu0 0.0
        %1043 = vmatpush.msra.mxu0 0.0
        %1044 = vmatpush.msra.mxu0 0.0
        %1045 = vmatpush.msra.mxu0 %v1032
        %1046 = vmatpush.msra.mxu0 %v1031
        %1047 = vmatpush.msra.mxu0 %v1030
        %1048 = vmatpush.msra.mxu0 %v1029
        %1049 = vmatpush.msra.mxu0 %v1028
        %1050 = vmatpush.msra.mxu0 %v1027
        %1051 = vmatpush.msra.mxu0 %v1026
        %1052 = vmatpush.msra.mxu0 %v1025
        %1053 = vmatmul.f32.gmra.mxu0 %v1035
        %v1054 = vpop.f32.mrf.mxu0
        %v1055 = vadd.f32 0.0, %v1054
        %1056 = vdwg.mxu0
        %1057 = vst.msk [vmem:[#allocation2] sm:$0xff] %vm474, %v1055
        %1058 = vst.msk [vmem:[#allocation3] sm:$0xff] %vm474, %v950
        %p1059 = scmp.eq.s32.totalorder %s23, 1
        // Predicated region
        $region69: #{granite_forward.1} parent=63 // pred_check
          %p1060 = pneg %p1059
        $region70: #{granite_forward.1} parent=63 // pred_check_branch
          %1062 = sbr.rel (%p1060) target = $region72
        $region71: #{granite_forward.1} parent=63 // pred_region
          %v1063 = vadd.f32 %v1055, %v950
          %v1064 = vld [vmem:[%s10] sm:$0x1]
          %v1065 = vmul.f32 %v1063, %v1063
          %v1066 = vsel %vm474, %v1065, 0.0
          %1067 = vadd.xlane.f32.xlu0 %v1066
          %v1068 = vpop.xlane.xlu0 %1067
          %v1069 = vmul.f32 %v1068, %v484
          %v1070 = vadd.f32 %v1069, 1e-06
          %v1071 = vrsqrt.pop %v1070
          %v1072 = vmul.f32 %v1071, %v1070
          %v1073 = vmul.f32 %v1072, %v1071
          %v1074 = vmul.f32 0.5, %v1073
          %v1075 = vsub.f32 1.5, %v1074
          %v1076 = vmul.f32 %v1071, %v1075
          %vm1077 = vweird.f32 %v1070
          %vm1078 = vweird.f32 %v1071
          %vm1079 = vmor %vm1077, %vm1078
          %v1080 = vsel %vm1079, %v1071, %v1076
          %v1081 = vmul.f32 %v1063, %v1080
          %v1083 = vperm.slane %v1064, 0
          %v1085 = vmul.f32 %v1081, %v1083
          %1086 = vst.msk [vmem:[#allocation4] sm:$0xff] %vm474, %v1085
        $region72: #{granite_forward.1} parent=63 // pred_fallthru
          _
        // Predicated region
        $region73: #{granite_forward.1} parent=63 // pred_check
          %p1087 = pneg %p297
        $region74: #{granite_forward.1} parent=63 // pred_check_branch
          %1089 = sbr.rel (%p1087) target = $region76
        $region75: #{granite_forward.1} parent=63 // pred_region
          %1091 = vsyncadd [#allocation5], 0
          %s1093 = sshll.u32 [#allocation4], 4
          %s1094 = int_to_ptr.vmem [resolvable:$true] %s1093
          %s1095 = sshll.u32 %s11, 4
          %s1096 = int_to_ptr.hbm [resolvable:$true] %s1095
          %1098 = dma.vmem_to_hbm [thread:$0]  %s1094, 128, %s1096, [#allocation5]
        $region76: #{granite_forward.1} parent=63 // pred_fallthru
          _
        // Predicated region
        $region77: #{granite_forward.1} parent=63 // pred_check
          %p1099 = pneg %p297
        $region78: #{granite_forward.1} parent=63 // pred_check_branch
          %1101 = sbr.rel (%p1099) target = $region80
        $region79: #{granite_forward.1} parent=63 // pred_region
          %1103 = dma.done [#allocation5], 128
        $region80: #{granite_forward.1} parent=63 // pred_fallthru
          _
      $region64: #{granite_forward.1} parent=5 // pred_fallthru
        _
      %p1104 = scmp.le.s32.totalorder 2, %s18
      // Predicated region
      $region81: #{granite_forward.1} parent=5 // pred_check
        %p1105 = pneg %p1104
      $region82: #{granite_forward.1} parent=5 // pred_check_branch
        %1107 = sbr.rel (%p1105) target = $region84
      $region83: #{granite_forward.1} parent=5 // pred_region
        %s1108 = ssub.s32 %s18, 2
      $region84: #{granite_forward.1} parent=5 // pred_fallthru
        _
    $region6: #{granite_forward.1} parent=1 // loop_footer
      %s22 = sadd.s32 1, %s18
    $region7: #{granite_forward.1} parent=1 // loop_footer_branch
      %17 = sbr.rel target = $region3
    $region8: #{granite_forward.1} parent=1 // loop_exit
      _
    %1109 = vsyncpa [#allocation5], 1
    %s1110 = scalar_lea.sflag [#allocation5], 1
    %1111 = vsyncpa %s1110, 1

</llo_original>
